<compile_context>
chip_gen: v7x
topology: tpu7x:2x2x1
jax: 0.10.0
libtpu: 0.0.40
codegen_flags: <defaults>
</compile_context>

<pallas_src>
import jax
import jax.numpy as jnp
from jax.experimental import pallas as pl
from jax.experimental.pallas import tpu as pltpu

_LANE = 128
_TM = 256  # A row-block tile (multiple of 256 -> full MXU M fill on v6e/v7x)


def _round_up(n: int, m: int) -> int:
    return ((n + m - 1) // m) * m


def _gnn_kernel(x_ref, a_ref, invdeg_ref, w1_ref, b1_ref, w2_ref, b2_ref,
                o_ref, xw1_ref, hw2_ref):
    phase = pl.program_id(0)
    i = pl.program_id(1)
    tm = x_ref.shape[0]
    row0 = pl.multiple_of(i * tm, tm)

    @pl.when(phase == 0)
    def _():
        # xw1[i] = X[i] @ W1   (bf16 MXU, f32 accumulate, stored bf16)
        xw1 = jnp.dot(x_ref[...], w1_ref[...],
                      preferred_element_type=jnp.float32)
        xw1_ref[pl.ds(row0, tm), :] = xw1.astype(xw1_ref.dtype)

    @pl.when(phase == 1)
    def _():
        # h[i] = leaky_relu((A[i] @ xw1) * inv_deg + b1);  hw2[i] = h[i] @ W2
        agg = jnp.dot(a_ref[...], xw1_ref[...],
                      preferred_element_type=jnp.float32)
        z = agg * invdeg_ref[...] + b1_ref[...]          # f32 VPU
        h = jnp.where(z > 0, z, 0.01 * z)                # F.leaky_relu default
        hw2 = jnp.dot(h.astype(w2_ref.dtype), w2_ref[...],
                      preferred_element_type=jnp.float32)
        hw2_ref[pl.ds(row0, tm), :] = hw2.astype(hw2_ref.dtype)

    @pl.when(phase == 2)
    def _():
        # out[i] = (A[i] @ hw2) * inv_deg + b2
        out = jnp.dot(a_ref[...], hw2_ref[...],
                      preferred_element_type=jnp.float32)
        out = out * invdeg_ref[...] + b2_ref[...]
        o_ref[...] = out.astype(o_ref.dtype)


def prepare_gnn_inputs(adj, x, params, tm=_TM):
    """One-time padding / casting / degree precompute (hoisted off hot path)."""
    n = adj.shape[0]
    f_in = x.shape[1]
    h_f = params["w1"].shape[1]
    n_cls = params["w2"].shape[1]

    n_p = _round_up(n, tm)
    f_p = _round_up(f_in, _LANE)
    h_p = _round_up(h_f, _LANE)
    c_p = _round_up(n_cls, _LANE)

    # DGL 'gcn' aggregator: (A^T X + X) / (in_deg + 1).
    # Keep A unnormalized (exact 0/1 in bf16); normalization stays f32.
    a_self = adj.T + jnp.eye(n, dtype=adj.dtype)
    deg = jnp.sum(adj, axis=0)
    inv_deg = 1.0 / (deg + 1.0)

    a_p = jnp.zeros((n_p, n_p), jnp.bfloat16).at[:n, :n].set(
        a_self.astype(jnp.bfloat16))
    x_p = jnp.zeros((n_p, f_p), jnp.bfloat16).at[:n, :f_in].set(
        x.astype(jnp.bfloat16))
    invdeg_p = jnp.zeros((n_p, 1), jnp.float32).at[:n, 0].set(
        inv_deg.astype(jnp.float32))
    w1_p = jnp.zeros((f_p, h_p), jnp.bfloat16).at[:f_in, :h_f].set(
        params["w1"].astype(jnp.bfloat16))
    w2_p = jnp.zeros((h_p, c_p), jnp.bfloat16).at[:h_f, :n_cls].set(
        params["w2"].astype(jnp.bfloat16))
    b1_p = jnp.zeros((1, h_p), jnp.float32).at[0, :h_f].set(
        params["b1"].astype(jnp.float32))
    b2_p = jnp.zeros((1, c_p), jnp.float32).at[0, :n_cls].set(
        params["b2"].astype(jnp.float32))

    return dict(a=a_p, x=x_p, invdeg=invdeg_p, w1=w1_p, b1=b1_p, w2=w2_p,
                b2=b2_p, n=n, n_cls=n_cls, tm=tm)


def gnn_forward_prepared(prep):
    """Hot path: one fused pallas_call over a (phase, row-block) grid."""
    a, x, invdeg = prep["a"], prep["x"], prep["invdeg"]
    w1, b1, w2, b2 = prep["w1"], prep["b1"], prep["w2"], prep["b2"]
    tm = prep["tm"]
    n_p = a.shape[0]
    f_p = x.shape[1]
    h_p = w1.shape[1]
    c_p = w2.shape[1]
    r = n_p // tm

    # Reordered FLOPs: A@(X@W1) and A@(h@W2).
    flops = int(2 * n_p * f_p * h_p            # X @ W1
                + 2 * n_p * n_p * h_p          # A @ xw1
                + 2 * n_p * h_p * c_p          # h @ W2
                + 2 * n_p * n_p * c_p)         # A @ hw2
    bytes_accessed = int(
        2 * a.size * 2                         # A streamed in phases 1 and 2
        + x.size * 2 + (w1.size + w2.size) * 2
        + (b1.size + b2.size) * 4 + 2 * invdeg.size * 4
        + n_p * c_p * 4)                       # output

    # VMEM budget: double-buffered streamed blocks + resident weights + scratch.
    vmem_need = (
        2 * tm * n_p * 2                       # A row blocks (bf16, 2x buffered)
        + 2 * tm * f_p * 2                     # X row blocks
        + 2 * tm * _LANE * 4                   # inv_deg blocks (lane-padded)
        + 2 * tm * c_p * 4                     # output blocks
        + (f_p * h_p + h_p * c_p) * 2 + (h_p + c_p) * 4
        + (n_p * h_p + n_p * c_p) * 2)         # persistent xw1 / hw2 scratch
    vmem_limit = min(max(32 << 20, int(vmem_need * 1.5) + (2 << 20)), 64 << 20)

    grid_spec = pltpu.PrefetchScalarGridSpec(
        num_scalar_prefetch=0,
        grid=(3, r),
        in_specs=[
            # X: only needed in phase 0; pinned to block 0 otherwise (no re-DMA).
            pl.BlockSpec((tm, f_p), lambda p, i: (jnp.where(p == 0, i, 0), 0)),
            # A: only needed in phases 1-2.
            pl.BlockSpec((tm, n_p), lambda p, i: (jnp.where(p == 0, 0, i), 0)),
            pl.BlockSpec((tm, 1), lambda p, i: (jnp.where(p == 0, 0, i), 0)),
            pl.BlockSpec((f_p, h_p), lambda p, i: (0, 0)),
            pl.BlockSpec((1, h_p), lambda p, i: (0, 0)),
            pl.BlockSpec((h_p, c_p), lambda p, i: (0, 0)),
            pl.BlockSpec((1, c_p), lambda p, i: (0, 0)),
        ],
        # Output only written in phase 2; pinned to block 0 before that so no
        # garbage block ever reaches HBM.
        out_specs=pl.BlockSpec((tm, c_p),
                               lambda p, i: (jnp.where(p == 2, i, 0), 0)),
        scratch_shapes=[
            pltpu.VMEM((n_p, h_p), jnp.bfloat16),   # xw1 = X @ W1
            pltpu.VMEM((n_p, c_p), jnp.bfloat16),   # hw2 = h @ W2
        ],
    )

    out_p = pl.pallas_call(
        _gnn_kernel,
        out_shape=jax.ShapeDtypeStruct((n_p, c_p), jnp.float32),
        grid_spec=grid_spec,
        compiler_params=pltpu.CompilerParams(
            # Phase axis carries cross-iteration scratch deps; row-block axis
            # also "arbitrary" because the scratch lives in per-core VMEM.
            dimension_semantics=("arbitrary", "arbitrary"),
            vmem_limit_bytes=vmem_limit,
        ),
        cost_estimate=pl.CostEstimate(flops=flops, transcendentals=0,
                                      bytes_accessed=bytes_accessed),
    )(x, a, invdeg, w1, b1, w2, b2)

    return out_p[:prep["n"], :prep["n_cls"]]


def gnn_forward(adj, x, params):
    """Convenience one-shot wrapper (prepare is normally hoisted/cached)."""
    return gnn_forward_prepared(prepare_gnn_inputs(adj, x, params))


def gnn_reference(adj, x, params):
    """Pure-JAX f32 reference for the numerical check."""
    n = adj.shape[0]
    deg = jnp.sum(adj, axis=0)
    a_hat = (adj.T + jnp.eye(n, dtype=adj.dtype)) / (deg[:, None] + 1.0)
    h = (a_hat @ x) @ params["w1"] + params["b1"]
    h = jnp.where(h > 0, h, 0.01 * h)
    h = (a_hat @ h) @ params["w2"] + params["b2"]
    return h


if __name__ == "__main__":
    key = jax.random.PRNGKey(0)
    k_adj, k_x, k_w1, k_b1, k_w2, k_b2 = jax.random.split(key, 6)

    # Small synthetic graph standing in for the Cora dataset graph.
    N = 32
    in_feats = 16
    h_feats = 32
    num_classes = 8

    # Random symmetric adjacency, no self loops.
    upper = (jax.random.uniform(k_adj, (N, N)) < 0.2).astype(jnp.float32)
    upper = jnp.triu(upper, k=1)
    adj = upper + upper.T

    # Node features.
    x = jax.random.normal(k_x, (N, in_feats), dtype=jnp.float32)

    # Parameters (shapes of SAGEConv fc_neigh weight^T / bias).
    params = {
        "w1": jax.random.normal(k_w1, (in_feats, h_feats), dtype=jnp.float32)
        * (1.0 / jnp.sqrt(in_feats)),
        "b1": jax.random.normal(k_b1, (h_feats,), dtype=jnp.float32) * 0.1,
        "w2": jax.random.normal(k_w2, (h_feats, num_classes), dtype=jnp.float32)
        * (1.0 / jnp.sqrt(h_feats)),
        "b2": jax.random.normal(k_b2, (num_classes,), dtype=jnp.float32) * 0.1,
    }

    # Padding / casting hoisted out of the per-forward path (constant graph).
    prep = prepare_gnn_inputs(adj, x, params)

    out = gnn_forward_prepared(prep)
    out = jax.block_until_ready(out)

    ref = gnn_reference(adj, x, params)
    assert out.shape == (N, num_classes)
    # Matmuls run in bf16 (f32 accumulate), so compare with bf16-level tolerance.
    assert jnp.allclose(out, ref, rtol=5e-2, atol=5e-2), "mismatch vs JAX reference"

    print("KERNEL_OK")
</pallas_src>

<mosaic_0001>
module attributes {stable_mosaic.version = 11 : i64} {
  func.func @_gnn_kernel(%arg0: i32, %arg1: i32, %arg2: memref<256x128xbf16, #tpu.memory_space<vmem>>, %arg3: memref<256x256xbf16, #tpu.memory_space<vmem>>, %arg4: memref<256x1xf32, #tpu.memory_space<vmem>>, %arg5: memref<128x128xbf16, #tpu.memory_space<vmem>>, %arg6: memref<1x128xf32, #tpu.memory_space<vmem>>, %arg7: memref<128x128xbf16, #tpu.memory_space<vmem>>, %arg8: memref<1x128xf32, #tpu.memory_space<vmem>>, %arg9: memref<256x128xf32, #tpu.memory_space<vmem>>, %arg10: memref<256x128xbf16, #tpu.memory_space<vmem>>, %arg11: memref<256x128xbf16, #tpu.memory_space<vmem>>) attributes {dimension_semantics = [#tpu.dimension_semantics<arbitrary>, #tpu.dimension_semantics<arbitrary>], iteration_bounds = array<i64: 3, 1>, scalar_prefetch = 0 : i64, scratch_operands = 2 : i64, tpu.core_type = #tpu.core_type<tc>, window_params = [{transform_indices = @transform_0, window_bounds = array<i64: 256, 128>}, {transform_indices = @transform_1, window_bounds = array<i64: 256, 256>}, {transform_indices = @transform_2, window_bounds = array<i64: 256, 1>}, {pipeline_mode = #tpu.pipeline_mode<synchronous>, transform_indices = @transform_3, window_bounds = array<i64: 128, 128>}, {pipeline_mode = #tpu.pipeline_mode<synchronous>, transform_indices = @transform_4, window_bounds = array<i64: 1, 128>}, {pipeline_mode = #tpu.pipeline_mode<synchronous>, transform_indices = @transform_5, window_bounds = array<i64: 128, 128>}, {pipeline_mode = #tpu.pipeline_mode<synchronous>, transform_indices = @transform_6, window_bounds = array<i64: 1, 128>}, {transform_indices = @transform_7, window_bounds = array<i64: 256, 128>}]} {
    %c256_i32 = arith.constant 256 : i32
    %0 = arith.muli %arg1, %c256_i32 : i32
    %1 = tpu.assume_multiple %0, 256 : i32
    %c0_i32 = arith.constant 0 : i32
    %2 = arith.cmpi eq, %arg0, %c0_i32 : i32
    %3 = arith.extui %2 : i1 to i32
    %c0_i32_0 = arith.constant 0 : i32
    %4 = arith.cmpi ne, %3, %c0_i32_0 : i32
    scf.if %4 {
      %c0 = arith.constant 0 : index
      %c0_3 = arith.constant 0 : index
      %11 = vector.load %arg2[%c0, %c0_3] : memref<256x128xbf16, #tpu.memory_space<vmem>>, vector<256x128xbf16>
      %c0_4 = arith.constant 0 : index
      %c0_5 = arith.constant 0 : index
      %12 = vector.load %arg5[%c0_4, %c0_5] : memref<128x128xbf16, #tpu.memory_space<vmem>>, vector<128x128xbf16>
      %cst = arith.constant dense<0.000000e+00> : vector<256x128xf32>
      %13 = tpu.matmul %11, %12, %cst {dimension_numbers = #tpu.dot_dimension_numbers<[1], [0], [0], [1], [0, 0, 1, 1], [], []>} : vector<256x128xbf16>, vector<128x128xbf16>, vector<256x128xf32> -> vector<256x128xf32>
      %14 = arith.truncf %13 : vector<256x128xf32> to vector<256x128xbf16>
      %15 = arith.index_cast %1 : i32 to index
      %c0_6 = arith.constant 0 : index
      %16 = vector.load %arg10[%15, %c0_6] : memref<256x128xbf16, #tpu.memory_space<vmem>>, vector<256x128xbf16>
      tpu.vector_store %arg10[%15, %c0_6], %14 {strides = array<i32>} : memref<256x128xbf16, #tpu.memory_space<vmem>>, vector<256x128xbf16>,
    } else {
    }
    %c1_i32 = arith.constant 1 : i32
    %5 = arith.cmpi eq, %arg0, %c1_i32 : i32
    %6 = arith.extui %5 : i1 to i32
    %c0_i32_1 = arith.constant 0 : i32
    %7 = arith.cmpi ne, %6, %c0_i32_1 : i32
    scf.if %7 {
      %c0 = arith.constant 0 : index
      %c0_3 = arith.constant 0 : index
      %11 = vector.load %arg3[%c0, %c0_3] : memref<256x256xbf16, #tpu.memory_space<vmem>>, vector<256x256xbf16>
      %c0_4 = arith.constant 0 : index
      %c0_5 = arith.constant 0 : index
      %12 = vector.load %arg10[%c0_4, %c0_5] : memref<256x128xbf16, #tpu.memory_space<vmem>>, vector<256x128xbf16>
      %cst = arith.constant dense<0.000000e+00> : vector<256x128xf32>
      %13 = tpu.matmul %11, %12, %cst {dimension_numbers = #tpu.dot_dimension_numbers<[1], [0], [0], [1], [0, 0, 1, 1], [], []>} : vector<256x256xbf16>, vector<256x128xbf16>, vector<256x128xf32> -> vector<256x128xf32>
      %c0_6 = arith.constant 0 : index
      %c0_7 = arith.constant 0 : index
      %14 = vector.load %arg4[%c0_6, %c0_7] : memref<256x1xf32, #tpu.memory_space<vmem>>, vector<256x1xf32>
      %15 = vector.broadcast %14 : vector<256x1xf32> to vector<256x128xf32>
      %16 = arith.mulf %13, %15 : vector<256x128xf32>
      %c0_8 = arith.constant 0 : index
      %c0_9 = arith.constant 0 : index
      %17 = vector.load %arg6[%c0_8, %c0_9] : memref<1x128xf32, #tpu.memory_space<vmem>>, vector<1x128xf32>
      %18 = vector.broadcast %17 : vector<1x128xf32> to vector<256x128xf32>
      %19 = arith.addf %16, %18 : vector<256x128xf32>
      %cst_10 = arith.constant 0.000000e+00 : f32
      %20 = vector.broadcast %cst_10 : f32 to vector<256x128xf32>
      %21 = arith.cmpf ogt, %19, %20 : vector<256x128xf32>
      %cst_11 = arith.constant 0.00999999977 : f32
      %22 = vector.broadcast %cst_11 : f32 to vector<256x128xf32>
      %23 = arith.mulf %22, %19 : vector<256x128xf32>
      %24 = arith.select %21, %19, %23 : vector<256x128xi1>, vector<256x128xf32>
      %25 = arith.truncf %24 : vector<256x128xf32> to vector<256x128xbf16>
      %c0_12 = arith.constant 0 : index
      %c0_13 = arith.constant 0 : index
      %26 = vector.load %arg7[%c0_12, %c0_13] : memref<128x128xbf16, #tpu.memory_space<vmem>>, vector<128x128xbf16>
      %cst_14 = arith.constant dense<0.000000e+00> : vector<256x128xf32>
      %27 = tpu.matmul %25, %26, %cst_14 {dimension_numbers = #tpu.dot_dimension_numbers<[1], [0], [0], [1], [0, 0, 1, 1], [], []>} : vector<256x128xbf16>, vector<128x128xbf16>, vector<256x128xf32> -> vector<256x128xf32>
      %28 = arith.truncf %27 : vector<256x128xf32> to vector<256x128xbf16>
      %29 = arith.index_cast %1 : i32 to index
      %c0_15 = arith.constant 0 : index
      %30 = vector.load %arg11[%29, %c0_15] : memref<256x128xbf16, #tpu.memory_space<vmem>>, vector<256x128xbf16>
      tpu.vector_store %arg11[%29, %c0_15], %28 {strides = array<i32>} : memref<256x128xbf16, #tpu.memory_space<vmem>>, vector<256x128xbf16>,
    } else {
    }
    %c2_i32 = arith.constant 2 : i32
    %8 = arith.cmpi eq, %arg0, %c2_i32 : i32
    %9 = arith.extui %8 : i1 to i32
    %c0_i32_2 = arith.constant 0 : i32
    %10 = arith.cmpi ne, %9, %c0_i32_2 : i32
    scf.if %10 {
      %c0 = arith.constant 0 : index
      %c0_3 = arith.constant 0 : index
      %11 = vector.load %arg3[%c0, %c0_3] : memref<256x256xbf16, #tpu.memory_space<vmem>>, vector<256x256xbf16>
      %c0_4 = arith.constant 0 : index
      %c0_5 = arith.constant 0 : index
      %12 = vector.load %arg11[%c0_4, %c0_5] : memref<256x128xbf16, #tpu.memory_space<vmem>>, vector<256x128xbf16>
      %cst = arith.constant dense<0.000000e+00> : vector<256x128xf32>
      %13 = tpu.matmul %11, %12, %cst {dimension_numbers = #tpu.dot_dimension_numbers<[1], [0], [0], [1], [0, 0, 1, 1], [], []>} : vector<256x256xbf16>, vector<256x128xbf16>, vector<256x128xf32> -> vector<256x128xf32>
      %c0_6 = arith.constant 0 : index
      %c0_7 = arith.constant 0 : index
      %14 = vector.load %arg4[%c0_6, %c0_7] : memref<256x1xf32, #tpu.memory_space<vmem>>, vector<256x1xf32>
      %15 = vector.broadcast %14 : vector<256x1xf32> to vector<256x128xf32>
      %16 = arith.mulf %13, %15 : vector<256x128xf32>
      %c0_8 = arith.constant 0 : index
      %c0_9 = arith.constant 0 : index
      %17 = vector.load %arg8[%c0_8, %c0_9] : memref<1x128xf32, #tpu.memory_space<vmem>>, vector<1x128xf32>
      %18 = vector.broadcast %17 : vector<1x128xf32> to vector<256x128xf32>
      %19 = arith.addf %16, %18 : vector<256x128xf32>
      %c0_10 = arith.constant 0 : index
      %c0_11 = arith.constant 0 : index
      %20 = vector.load %arg9[%c0_10, %c0_11] : memref<256x128xf32, #tpu.memory_space<vmem>>, vector<256x128xf32>
      tpu.vector_store %arg9[%c0_10, %c0_11], %19 {strides = array<i32>} : memref<256x128xf32, #tpu.memory_space<vmem>>, vector<256x128xf32>,
    } else {
    }
    return
  }
  func.func @transform_0(%arg0: i32, %arg1: i32) -> (i32, i32) {
    %c0_i32 = arith.constant 0 : i32
    %0 = arith.cmpi eq, %arg0, %c0_i32 : i32
    %c0_i32_0 = arith.constant 0 : i32
    %1 = arith.select %0, %arg1, %c0_i32_0 : i32
    %c0_i32_1 = arith.constant 0 : i32
    %c0_i32_2 = arith.constant 0 : i32
    return %1, %c0_i32_1 : i32, i32
  }
  func.func @transform_1(%arg0: i32, %arg1: i32) -> (i32, i32) {
    %c0_i32 = arith.constant 0 : i32
    %0 = arith.cmpi eq, %arg0, %c0_i32 : i32
    %c0_i32_0 = arith.constant 0 : i32
    %1 = arith.select %0, %c0_i32_0, %arg1 : i32
    %c0_i32_1 = arith.constant 0 : i32
    %c0_i32_2 = arith.constant 0 : i32
    return %1, %c0_i32_1 : i32, i32
  }
  func.func @transform_2(%arg0: i32, %arg1: i32) -> (i32, i32) {
    %c0_i32 = arith.constant 0 : i32
    %0 = arith.cmpi eq, %arg0, %c0_i32 : i32
    %c0_i32_0 = arith.constant 0 : i32
    %1 = arith.select %0, %c0_i32_0, %arg1 : i32
    %c0_i32_1 = arith.constant 0 : i32
    %c0_i32_2 = arith.constant 0 : i32
    return %1, %c0_i32_1 : i32, i32
  }
  func.func @transform_3(%arg0: i32, %arg1: i32) -> (i32, i32) {
    %c0_i32 = arith.constant 0 : i32
    %c0_i32_0 = arith.constant 0 : i32
    %c0_i32_1 = arith.constant 0 : i32
    return %c0_i32, %c0_i32_0 : i32, i32
  }
  func.func @transform_4(%arg0: i32, %arg1: i32) -> (i32, i32) {
    %c0_i32 = arith.constant 0 : i32
    %c0_i32_0 = arith.constant 0 : i32
    %c0_i32_1 = arith.constant 0 : i32
    return %c0_i32, %c0_i32_0 : i32, i32
  }
  func.func @transform_5(%arg0: i32, %arg1: i32) -> (i32, i32) {
    %c0_i32 = arith.constant 0 : i32
    %c0_i32_0 = arith.constant 0 : i32
    %c0_i32_1 = arith.constant 0 : i32
    return %c0_i32, %c0_i32_0 : i32, i32
  }
  func.func @transform_6(%arg0: i32, %arg1: i32) -> (i32, i32) {
    %c0_i32 = arith.constant 0 : i32
    %c0_i32_0 = arith.constant 0 : i32
    %c0_i32_1 = arith.constant 0 : i32
    return %c0_i32, %c0_i32_0 : i32, i32
  }
  func.func @transform_7(%arg0: i32, %arg1: i32) -> (i32, i32) {
    %c2_i32 = arith.constant 2 : i32
    %0 = arith.cmpi eq, %arg0, %c2_i32 : i32
    %c0_i32 = arith.constant 0 : i32
    %1 = arith.select %0, %arg1, %c0_i32 : i32
    %c0_i32_0 = arith.constant 0 : i32
    %c0_i32_1 = arith.constant 0 : i32
    return %1, %c0_i32_0 : i32, i32
  }
}

</mosaic_0001>

<llo_original>
// kernel: tpu_custom_call.1
$region0: #{tpu_custom_call.1}
  #allocation0 [shape = 'u32[]', space=smem, size = 0x4, offset = 0x4, fixed_abs, tag = 'smem constant byte address 0x4 - core index']
  #allocation1 [shape = 'u32[144,128]{1,0:T(1,128)}', space=vmem, size = 0x12000, scoped, tag = 'internal scratch']
  #allocation2 [shape = 'bf16[256,128]{1,0:T(16,128)(2,1)}', space=vmem, size = 0x10000, scoped, tag = 'scratch operand']
  #allocation3 [shape = 'bf16[256,128]{1,0:T(16,128)(2,1)}', space=vmem, size = 0x10000, scoped, tag = 'scratch operand']
  %s0 = inlined_call_operand.hbm [shape: bf16[256,128], index: 0, kind: input, shape index: {}]
  %s1 = inlined_call_operand.vmem [shape: bf16[256,256], index: 1, kind: input, shape index: {}]
  %s2 = inlined_call_operand.vmem [shape: f32[256,1], index: 2, kind: input, shape index: {}]
  %s3 = inlined_call_operand.hbm [shape: bf16[128,128], index: 3, kind: input, shape index: {}]
  %s4 = inlined_call_operand.vmem [shape: f32[1,128], index: 4, kind: input, shape index: {}]
  %s5 = inlined_call_operand.hbm [shape: bf16[128,128], index: 5, kind: input, shape index: {}]
  %s6 = inlined_call_operand.vmem [shape: f32[1,128], index: 6, kind: input, shape index: {}]
  %s7 = inlined_call_operand.hbm [shape: f32[256,128], index: 7, kind: output, shape index: {}]
  %s8 = sld [smem:[#allocation0]]
  $region85: #{tpu_custom_call.1} parent=0
    _
  %s10 = ssub.s32 1, %s8
  %s11 = scalar_select 0, %s10, %s8
  $region1: #{tpu_custom_call.1} parent=0
    #allocation4 [shape = 'u8[131072]{0}', space=vmem, size = 0x20000, scoped, tag = 'input window, operand 0']
    #allocation5 [shape = 's32[2]{0}', space=sflag, size = 0x8, scoped, tag = 'scoped memory for tpu_custom_call.1']
    #allocation6 [shape = 's32[2]{0}', space=sflag, size = 0x8, scoped, tag = 'scoped memory for tpu_custom_call.1']
    #allocation7 [shape = 'u8[32768]{0}', space=vmem, size = 0x8000, scoped, tag = 'input window, operand 3, single buffered']
    #allocation8 [shape = 's32[1]{0}', space=sflag, size = 0x4, scoped, tag = 'scoped memory for tpu_custom_call.1']
    #allocation9 [shape = 'u8[32768]{0}', space=vmem, size = 0x8000, scoped, tag = 'input window, operand 5, single buffered']
    #allocation10 [shape = 'u8[262144]{0}', space=vmem, size = 0x40000, scoped, tag = 'output window, operand 0']
    %12 = vsyncpa [#allocation5], 0
    %s13 = scalar_lea.sflag [#allocation5], 1
    %14 = vsyncpa %s13, 0
    %15 = vsyncpa [#allocation8], 0
    %16 = vsyncpa [#allocation6], 0
    %s17 = scalar_lea.sflag [#allocation6], 1
    %18 = vsyncpa %s17, 0
    loop: start=0, step=1, limit=5
    $region2: #{tpu_custom_call.1} parent=1 // loop_pre_header
      _
    $region3: #{tpu_custom_call.1} parent=1 // loop_header
      %s20 = sphi 0, %s24
      %p21 = scmp.ge.s32.totalorder %s20, 5
      %s27 = sphi 0, %s39
      %s28 = sphi 0, %s35
      %s29 = sphi 0, %s27
      %s30 = sphi 0, %s28
      %s31 = sphi 0, %s29
      %s32 = sphi 0, %s30
      %s46 = sphi 0, %s48
      %s49 = sphi 0, %s46
      %s50 = sphi 0, %s49
      %s66 = sphi 0, %s50
      %s76 = sphi 0, %s78
      %s79 = sphi 0, %s76
      %s80 = sphi 0, %s79
      %s96 = sphi 0, %s80
      %s106 = sphi 0, %s108
      %s109 = sphi 0, %s106
      %s110 = sphi 0, %s109
      %s126 = sphi 0, %s110
      %s130 = sphi 0, %s130
      %s132 = sphi 0, %s130
      %s133 = sphi 0, %s132
      %s147 = sphi 0, %s133
      %s151 = sphi 0, %s151
      %s153 = sphi 0, %s151
      %s154 = sphi 0, %s153
      %s168 = sphi 0, %s154
      %s172 = sphi 0, %s172
      %s174 = sphi 0, %s172
      %s175 = sphi 0, %s174
      %s189 = sphi 0, %s175
      %s193 = sphi 0, %s193
      %s195 = sphi 0, %s193
      %s196 = sphi 0, %s195
      %s210 = sphi 0, %s196
      %s220 = sphi 0, %s222
      %s223 = sphi 0, %s220
      %s224 = sphi 0, %s223
      %s240 = sphi 0, %s224
    $region4: #{tpu_custom_call.1} parent=1 // loop_header_branch
      %23 = sbr.rel (%p21) target = $region8
    $region5: #{tpu_custom_call.1} parent=1 // loop_body
      %s25 = ssub.s32 %s20, 1
      %s26 = ssub.s32 %s20, 2
      %s33 = sadd.s32 1, %s28
      %p34 = scmp.ge.s32.totalorder %s33, 1
      %s35 = scalar_select %p34, 0, %s33
      %s36 = sadd.s32 1, %s27
      %s37 = scalar_select %p34, %s36, %s27
      %p38 = scmp.ge.s32.totalorder %s37, 3
      %s39 = scalar_select %p38, 0, %s37
      %p40 = scmp.eq.s32.totalorder %s27, 0
      %s41 = scalar_select %p40, %s28, 0
      %p42 = scmp.eq.s32.totalorder %s39, 0
      %s43 = scalar_select %p42, %s35, 0
      %s44 = ssub.s32 %s41, %s43
      %p45 = scmp.eq.s32.totalorder %s44, 0
      %s47 = sadd.s32 %s46, 1
      %s48 = scalar_select %p45, %s46, %s47
      %p51 = pneg %p45
      %p52 = scmp.eq.s32.totalorder %s20, 2
      %p53 = por %p51, %p52
      %p54 = scmp.ne.s32.totalorder %s46, %s49
      %p55 = scmp.eq.s32.totalorder %s20, 0
      %p56 = por %p54, %p55
      %p57 = scmp.ne.s32.totalorder %s46, %s49
      %p58 = scmp.eq.s32.totalorder %s25, 2
      %p59 = por %p57, %p58
      %p60 = scmp.ne.s32.totalorder %s49, %s50
      %p61 = scmp.eq.s32.totalorder %s25, 0
      %p62 = por %p60, %p61
      %p63 = scmp.ne.s32.totalorder %s49, %s50
      %p64 = scmp.eq.s32.totalorder %s26, 2
      %p65 = por %p63, %p64
      %p67 = scmp.ne.s32.totalorder %s50, %s66
      %p68 = scmp.eq.s32.totalorder %s26, 0
      %p69 = por %p67, %p68
      %p70 = scmp.eq.s32.totalorder %s27, 0
      %s71 = scalar_select %p70, 0, %s28
      %p72 = scmp.eq.s32.totalorder %s39, 0
      %s73 = scalar_select %p72, 0, %s35
      %s74 = ssub.s32 %s71, %s73
      %p75 = scmp.eq.s32.totalorder %s74, 0
      %s77 = sadd.s32 %s76, 1
      %s78 = scalar_select %p75, %s76, %s77
      %p81 = pneg %p75
      %p82 = scmp.eq.s32.totalorder %s20, 2
      %p83 = por %p81, %p82
      %p84 = scmp.ne.s32.totalorder %s76, %s79
      %p85 = scmp.eq.s32.totalorder %s20, 0
      %p86 = por %p84, %p85
      %p87 = scmp.ne.s32.totalorder %s76, %s79
      %p88 = scmp.eq.s32.totalorder %s25, 2
      %p89 = por %p87, %p88
      %p90 = scmp.ne.s32.totalorder %s79, %s80
      %p91 = scmp.eq.s32.totalorder %s25, 0
      %p92 = por %p90, %p91
      %p93 = scmp.ne.s32.totalorder %s79, %s80
      %p94 = scmp.eq.s32.totalorder %s26, 2
      %p95 = por %p93, %p94
      %p97 = scmp.ne.s32.totalorder %s80, %s96
      %p98 = scmp.eq.s32.totalorder %s26, 0
      %p99 = por %p97, %p98
      %p100 = scmp.eq.s32.totalorder %s27, 0
      %s101 = scalar_select %p100, 0, %s28
      %p102 = scmp.eq.s32.totalorder %s39, 0
      %s103 = scalar_select %p102, 0, %s35
      %s104 = ssub.s32 %s101, %s103
      %p105 = scmp.eq.s32.totalorder %s104, 0
      %s107 = sadd.s32 %s106, 1
      %s108 = scalar_select %p105, %s106, %s107
      %p111 = pneg %p105
      %p112 = scmp.eq.s32.totalorder %s20, 2
      %p113 = por %p111, %p112
      %p114 = scmp.ne.s32.totalorder %s106, %s109
      %p115 = scmp.eq.s32.totalorder %s20, 0
      %p116 = por %p114, %p115
      %p117 = scmp.ne.s32.totalorder %s106, %s109
      %p118 = scmp.eq.s32.totalorder %s25, 2
      %p119 = por %p117, %p118
      %p120 = scmp.ne.s32.totalorder %s109, %s110
      %p121 = scmp.eq.s32.totalorder %s25, 0
      %p122 = por %p120, %p121
      %p123 = scmp.ne.s32.totalorder %s109, %s110
      %p124 = scmp.eq.s32.totalorder %s26, 2
      %p125 = por %p123, %p124
      %p127 = scmp.ne.s32.totalorder %s110, %s126
      %p128 = scmp.eq.s32.totalorder %s26, 0
      %p129 = por %p127, %p128
      %s131 = sadd.s32 %s130, 1
      %p134 = scmp.eq.s32.totalorder %s20, 2
      %p135 = scmp.ne.s32.totalorder %s130, %s132
      %p136 = scmp.eq.s32.totalorder %s20, 0
      %p137 = por %p135, %p136
      %p138 = scmp.ne.s32.totalorder %s130, %s132
      %p139 = scmp.eq.s32.totalorder %s25, 2
      %p140 = por %p138, %p139
      %p141 = scmp.ne.s32.totalorder %s132, %s133
      %p142 = scmp.eq.s32.totalorder %s25, 0
      %p143 = por %p141, %p142
      %p144 = scmp.ne.s32.totalorder %s132, %s133
      %p145 = scmp.eq.s32.totalorder %s26, 2
      %p146 = por %p144, %p145
      %p148 = scmp.ne.s32.totalorder %s133, %s147
      %p149 = scmp.eq.s32.totalorder %s26, 0
      %p150 = por %p148, %p149
      %s152 = sadd.s32 %s151, 1
      %p155 = scmp.eq.s32.totalorder %s20, 2
      %p156 = scmp.ne.s32.totalorder %s151, %s153
      %p157 = scmp.eq.s32.totalorder %s20, 0
      %p158 = por %p156, %p157
      %p159 = scmp.ne.s32.totalorder %s151, %s153
      %p160 = scmp.eq.s32.totalorder %s25, 2
      %p161 = por %p159, %p160
      %p162 = scmp.ne.s32.totalorder %s153, %s154
      %p163 = scmp.eq.s32.totalorder %s25, 0
      %p164 = por %p162, %p163
      %p165 = scmp.ne.s32.totalorder %s153, %s154
      %p166 = scmp.eq.s32.totalorder %s26, 2
      %p167 = por %p165, %p166
      %p169 = scmp.ne.s32.totalorder %s154, %s168
      %p170 = scmp.eq.s32.totalorder %s26, 0
      %p171 = por %p169, %p170
      %s173 = sadd.s32 %s172, 1
      %p176 = scmp.eq.s32.totalorder %s20, 2
      %p177 = scmp.ne.s32.totalorder %s172, %s174
      %p178 = scmp.eq.s32.totalorder %s20, 0
      %p179 = por %p177, %p178
      %p180 = scmp.ne.s32.totalorder %s172, %s174
      %p181 = scmp.eq.s32.totalorder %s25, 2
      %p182 = por %p180, %p181
      %p183 = scmp.ne.s32.totalorder %s174, %s175
      %p184 = scmp.eq.s32.totalorder %s25, 0
      %p185 = por %p183, %p184
      %p186 = scmp.ne.s32.totalorder %s174, %s175
      %p187 = scmp.eq.s32.totalorder %s26, 2
      %p188 = por %p186, %p187
      %p190 = scmp.ne.s32.totalorder %s175, %s189
      %p191 = scmp.eq.s32.totalorder %s26, 0
      %p192 = por %p190, %p191
      %s194 = sadd.s32 %s193, 1
      %p197 = scmp.eq.s32.totalorder %s20, 2
      %p198 = scmp.ne.s32.totalorder %s193, %s195
      %p199 = scmp.eq.s32.totalorder %s20, 0
      %p200 = por %p198, %p199
      %p201 = scmp.ne.s32.totalorder %s193, %s195
      %p202 = scmp.eq.s32.totalorder %s25, 2
      %p203 = por %p201, %p202
      %p204 = scmp.ne.s32.totalorder %s195, %s196
      %p205 = scmp.eq.s32.totalorder %s25, 0
      %p206 = por %p204, %p205
      %p207 = scmp.ne.s32.totalorder %s195, %s196
      %p208 = scmp.eq.s32.totalorder %s26, 2
      %p209 = por %p207, %p208
      %p211 = scmp.ne.s32.totalorder %s196, %s210
      %p212 = scmp.eq.s32.totalorder %s26, 0
      %p213 = por %p211, %p212
      %p214 = scmp.eq.s32.totalorder %s27, 2
      %s215 = scalar_select %p214, %s28, 0
      %p216 = scmp.eq.s32.totalorder %s39, 2
      %s217 = scalar_select %p216, %s35, 0
      %s218 = ssub.s32 %s215, %s217
      %p219 = scmp.eq.s32.totalorder %s218, 0
      %s221 = sadd.s32 %s220, 1
      %s222 = scalar_select %p219, %s220, %s221
      %p225 = pneg %p219
      %p226 = scmp.eq.s32.totalorder %s20, 2
      %p227 = por %p225, %p226
      %p228 = scmp.ne.s32.totalorder %s220, %s223
      %p229 = scmp.eq.s32.totalorder %s20, 0
      %p230 = por %p228, %p229
      %p231 = scmp.ne.s32.totalorder %s220, %s223
      %p232 = scmp.eq.s32.totalorder %s25, 2
      %p233 = por %p231, %p232
      %p234 = scmp.ne.s32.totalorder %s223, %s224
      %p235 = scmp.eq.s32.totalorder %s25, 0
      %p236 = por %p234, %p235
      %p237 = scmp.ne.s32.totalorder %s223, %s224
      %p238 = scmp.eq.s32.totalorder %s26, 2
      %p239 = por %p237, %p238
      %p241 = scmp.ne.s32.totalorder %s224, %s240
      %p242 = scmp.eq.s32.totalorder %s26, 0
      %p243 = por %p241, %p242
      %p244 = scmp.le.s32.totalorder 1, %s20
      %p245 = scmp.lt.s32.totalorder %s20, 4
      %p246 = pnand %p244, %p245
      %p247 = pneg %p246
      // Predicated region
      $region9: #{tpu_custom_call.1} parent=5 // pred_check
        _
      $region10: #{tpu_custom_call.1} parent=5 // pred_check_branch
        %249 = sbr.rel (%p246) target = $region12
      $region11: #{tpu_custom_call.1} parent=5 // pred_region
        %s250 = ssub.s32 %s20, 1
        // Predicated region
        $region13: #{tpu_custom_call.1} parent=11 // pred_check
          %p251 = pneg %p143
        $region14: #{tpu_custom_call.1} parent=11 // pred_check_branch
          %253 = sbr.rel (%p251) target = $region16
        $region15: #{tpu_custom_call.1} parent=11 // pred_region
          %s255 = ssub.s32 1024, 1024
          %256 = vsyncadd [#allocation8], %s255
          %s257 = sshll.u32 [#allocation7], 4
          %s258 = int_to_ptr.vmem [resolvable:$true] %s257
          %263 = dma.hbm_to_vmem [thread:$0]  %s3, 1024, %s258, [#allocation8], 64, 64, 4
        $region16: #{tpu_custom_call.1} parent=11 // pred_fallthru
          _
        // Predicated region
        $region17: #{tpu_custom_call.1} parent=11 // pred_check
          %p264 = pneg %p164
        $region18: #{tpu_custom_call.1} parent=11 // pred_check_branch
          %266 = sbr.rel (%p264) target = $region20
        $region19: #{tpu_custom_call.1} parent=11 // pred_region
          _
        $region20: #{tpu_custom_call.1} parent=11 // pred_fallthru
          _
        // Predicated region
        $region21: #{tpu_custom_call.1} parent=11 // pred_check
          %p267 = pneg %p185
        $region22: #{tpu_custom_call.1} parent=11 // pred_check_branch
          %269 = sbr.rel (%p267) target = $region24
        $region23: #{tpu_custom_call.1} parent=11 // pred_region
          %s271 = ssub.s32 1024, 1024
          %272 = vsyncadd [#allocation8], %s271
          %s273 = sshll.u32 [#allocation9], 4
          %s274 = int_to_ptr.vmem [resolvable:$true] %s273
          %279 = dma.hbm_to_vmem [thread:$0]  %s5, 1024, %s274, [#allocation8], 64, 64, 4
        $region24: #{tpu_custom_call.1} parent=11 // pred_fallthru
          _
        // Predicated region
        $region25: #{tpu_custom_call.1} parent=11 // pred_check
          %p280 = pneg %p206
        $region26: #{tpu_custom_call.1} parent=11 // pred_check_branch
          %282 = sbr.rel (%p280) target = $region28
        $region27: #{tpu_custom_call.1} parent=11 // pred_region
          _
        $region28: #{tpu_custom_call.1} parent=11 // pred_fallthru
          _
      $region12: #{tpu_custom_call.1} parent=5 // pred_fallthru
        _
      %p283 = scmp.lt.s32.totalorder %s20, 3
      // Predicated region
      $region29: #{tpu_custom_call.1} parent=5 // pred_check
        %p284 = pneg %p283
      $region30: #{tpu_custom_call.1} parent=5 // pred_check_branch
        %286 = sbr.rel (%p284) target = $region32
      $region31: #{tpu_custom_call.1} parent=5 // pred_region
        // Predicated region
        $region33: #{tpu_custom_call.1} parent=31 // pred_check
          %p287 = pneg %p56
        $region34: #{tpu_custom_call.1} parent=31 // pred_check_branch
          %289 = sbr.rel (%p287) target = $region36
        $region35: #{tpu_custom_call.1} parent=31 // pred_region
          %s290 = sand.u32 %s46, 1
          %s291 = scalar_lea.sflag [#allocation5], %s290
          %s292 = sand.u32 %s46, 1
          %s293 = smul.addr %s292, 128
          %s294 = scalar_lea.vmem [#allocation4], %s293
          %p295 = scmp.eq.s32.totalorder %s27, 0
          %s296 = scalar_select %p295, %s28, 0
          %s297 = smul.u32 32, %s296
          %s299 = ssub.s32 2048, 2048
          %300 = vsyncadd %s291, %s299
          %s301 = smul.addr %s297, 64
          %s302 = scalar_lea.hbm %s0, %s301
          %s303 = sshll.u32 %s294, 4
          %s304 = int_to_ptr.vmem [resolvable:$true] %s303
          %309 = dma.hbm_to_vmem [thread:$0]  %s302, 2048, %s304, %s291, 64, 64, 4
        $region36: #{tpu_custom_call.1} parent=31 // pred_fallthru
          _
        // Predicated region
        $region37: #{tpu_custom_call.1} parent=31 // pred_check
          %p310 = pneg %p86
        $region38: #{tpu_custom_call.1} parent=31 // pred_check_branch
          %312 = sbr.rel (%p310) target = $region40
        $region39: #{tpu_custom_call.1} parent=31 // pred_region
          %p313 = scmp.eq.s32.totalorder %s27, 0
          %s314 = scalar_select %p313, 0, %s28
          %s315 = smul.u32 32, %s314
          %p316 = scmp.lt.s32.totalorder %s315, 31
          %s317 = scalar_select %p316, %s315, 31
          %s318 = smul.addr %s317, 2
          %s319 = smul.addr %s318, 4
          %s320 = scalar_lea.vmem %s1, %s319
          %p321 = scmp.eq.s32.totalorder %s27, 0
          %s322 = scalar_select %p321, 0, %s28
          %s323 = smul.u32 32, %s322
        $region40: #{tpu_custom_call.1} parent=31 // pred_fallthru
          _
        // Predicated region
        $region41: #{tpu_custom_call.1} parent=31 // pred_check
          %p324 = pneg %p116
        $region42: #{tpu_custom_call.1} parent=31 // pred_check_branch
          %326 = sbr.rel (%p324) target = $region44
        $region43: #{tpu_custom_call.1} parent=31 // pred_region
          %p327 = scmp.eq.s32.totalorder %s27, 0
          %s328 = scalar_select %p327, 0, %s28
          %s329 = smul.u32 32, %s328
          %p330 = scmp.lt.s32.totalorder %s329, 31
          %s331 = scalar_select %p330, %s329, 31
          %s332 = smul.addr %s331, 8
          %s333 = scalar_lea.vmem %s2, %s332
          %p334 = scmp.eq.s32.totalorder %s27, 0
          %s335 = scalar_select %p334, 0, %s28
          %s336 = smul.u32 32, %s335
        $region44: #{tpu_custom_call.1} parent=31 // pred_fallthru
          _
      $region32: #{tpu_custom_call.1} parent=5 // pred_fallthru
        _
      %p337 = scmp.le.s32.totalorder 1, %s20
      %p338 = scmp.lt.s32.totalorder %s20, 4
      %p339 = pnand %p337, %p338
      %p340 = pneg %p339
      // Predicated region
      $region45: #{tpu_custom_call.1} parent=5 // pred_check
        _
      $region46: #{tpu_custom_call.1} parent=5 // pred_check_branch
        %342 = sbr.rel (%p339) target = $region48
      $region47: #{tpu_custom_call.1} parent=5 // pred_region
        %s343 = ssub.s32 %s20, 1
        %s344 = sand.u32 %s49, 1
        %s345 = scalar_lea.sflag [#allocation5], %s344
        %s346 = sand.u32 %s49, 1
        %s347 = smul.addr %s346, 128
        %s348 = scalar_lea.vmem [#allocation4], %s347
        // Predicated region
        $region49: #{tpu_custom_call.1} parent=47 // pred_check
          %p349 = pneg %p62
        $region50: #{tpu_custom_call.1} parent=47 // pred_check_branch
          %351 = sbr.rel (%p349) target = $region52
        $region51: #{tpu_custom_call.1} parent=47 // pred_region
          %352 = dma.done %s345, 2048
        $region52: #{tpu_custom_call.1} parent=47 // pred_fallthru
          _
        // Predicated region
        $region53: #{tpu_custom_call.1} parent=47 // pred_check
          %p353 = pneg %p143
        $region54: #{tpu_custom_call.1} parent=47 // pred_check_branch
          %355 = sbr.rel (%p353) target = $region56
        $region55: #{tpu_custom_call.1} parent=47 // pred_region
          %356 = dma.done [#allocation8], 1024
        $region56: #{tpu_custom_call.1} parent=47 // pred_fallthru
          _
        // Predicated region
        $region57: #{tpu_custom_call.1} parent=47 // pred_check
          %p357 = pneg %p185
        $region58: #{tpu_custom_call.1} parent=47 // pred_check_branch
          %359 = sbr.rel (%p357) target = $region60
        $region59: #{tpu_custom_call.1} parent=47 // pred_region
          %360 = dma.done [#allocation8], 1024
        $region60: #{tpu_custom_call.1} parent=47 // pred_fallthru
          _
        %s361 = sand.u32 %s49, 1
        %s362 = scalar_lea.sflag [#allocation5], %s361
        %s363 = sand.u32 %s49, 1
        %s364 = smul.addr %s363, 128
        %s365 = scalar_lea.vmem [#allocation4], %s364
        %p366 = pneg %p62
        %p367 = pneg %p59
        %p368 = scmp.eq.s32.totalorder %s29, 0
        %s369 = scalar_select %p368, 0, %s30
        %s370 = smul.u32 32, %s369
        %p371 = scmp.lt.s32.totalorder %s370, 31
        %s372 = scalar_select %p371, %s370, 31
        %s373 = smul.addr %s372, 2
        %s374 = smul.addr %s373, 4
        %s375 = scalar_lea.vmem %s1, %s374
        %p376 = pneg %p92
        %p377 = pneg %p89
        %p378 = scmp.eq.s32.totalorder %s29, 0
        %s379 = scalar_select %p378, 0, %s30
        %s380 = smul.u32 32, %s379
        %p381 = scmp.lt.s32.totalorder %s380, 31
        %s382 = scalar_select %p381, %s380, 31
        %s383 = smul.addr %s382, 8
        %s384 = scalar_lea.vmem %s2, %s383
        %p385 = pneg %p122
        %p386 = pneg %p119
        %p387 = pneg %p143
        %p388 = pneg %p140
        %p389 = pneg %p164
        %p390 = pneg %p161
        %p391 = pneg %p185
        %p392 = pneg %p182
        %p393 = pneg %p206
        %p394 = pneg %p203
        %p395 = pneg %p236
        %p396 = pneg %p233
        %s397 = sand.u32 %s223, 1
        %s398 = scalar_lea.sflag [#allocation6], %s397
        %s399 = sand.u32 %s223, 1
        %s400 = smul.addr %s399, 256
        %s401 = scalar_lea.vmem [#allocation10], %s400
        %p402 = scmp.eq.s32.totalorder %s29, 0
        %s403 = scalar_select %p402, %s30, 0
        %s404 = smul.u32 32, %s403
        %p405 = scmp.eq.s32.totalorder %s29, 0
        %s406 = scalar_select %p405, 0, %s30
        %s407 = smul.u32 32, %s406
        %p408 = scmp.lt.s32.totalorder %s407, 31
        %s409 = scalar_select %p408, %s407, 31
        %s410 = smul.addr %s409, 2
        %s411 = smul.addr %s410, 4
        %s412 = scalar_lea.vmem %s1, %s411
        %p413 = scmp.eq.s32.totalorder %s29, 0
        %s414 = scalar_select %p413, 0, %s30
        %s415 = smul.u32 32, %s414
        %p416 = scmp.eq.s32.totalorder %s29, 0
        %s417 = scalar_select %p416, 0, %s30
        %s418 = smul.u32 32, %s417
        %p419 = scmp.lt.s32.totalorder %s418, 31
        %s420 = scalar_select %p419, %s418, 31
        %s421 = smul.addr %s420, 8
        %s422 = scalar_lea.vmem %s2, %s421
        %p423 = scmp.eq.s32.totalorder %s29, 0
        %s424 = scalar_select %p423, 0, %s30
        %s425 = smul.u32 32, %s424
        %p426 = scmp.eq.s32.totalorder %s29, 2
        %s427 = scalar_select %p426, %s30, 0
        %s428 = smul.u32 32, %s427
        %s430 = smul.u32 %s30, 256
        %p431 = scmp.eq.s32.totalorder %s29, 0
        // Predicated region
        $region61: #{tpu_custom_call.1} parent=47 // pred_check
          %p432 = pneg %p431
        $region62: #{tpu_custom_call.1} parent=47 // pred_check_branch
          %434 = sbr.rel (%p432) target = $region64
        $region63: #{tpu_custom_call.1} parent=47 // pred_region
          %v435 = vld [vmem:[%s348] sm:$0xf]
          %v436 = vld [vmem:[%s348 + $0x4] sm:$0xf]
          %v437 = vld [vmem:[%s348 + $0x8] sm:$0xf]
          %v438 = vld [vmem:[%s348 + $0xc] sm:$0xf]
          %v439 = vld [vmem:[%s348 + $0x10] sm:$0xf]
          %v440 = vld [vmem:[%s348 + $0x14] sm:$0xf]
          %v441 = vld [vmem:[%s348 + $0x18] sm:$0xf]
          %v442 = vld [vmem:[%s348 + $0x1c] sm:$0xf]
          %v443 = vld [vmem:[%s348 + $0x20] sm:$0xf]
          %v444 = vld [vmem:[%s348 + $0x24] sm:$0xf]
          %v445 = vld [vmem:[%s348 + $0x28] sm:$0xf]
          %v446 = vld [vmem:[%s348 + $0x2c] sm:$0xf]
          %v447 = vld [vmem:[%s348 + $0x30] sm:$0xf]
          %v448 = vld [vmem:[%s348 + $0x34] sm:$0xf]
          %v449 = vld [vmem:[%s348 + $0x38] sm:$0xf]
          %v450 = vld [vmem:[%s348 + $0x3c] sm:$0xf]
          %v451 = vld [vmem:[%s348 + $0x40] sm:$0xf]
          %v452 = vld [vmem:[%s348 + $0x44] sm:$0xf]
          %v453 = vld [vmem:[%s348 + $0x48] sm:$0xf]
          %v454 = vld [vmem:[%s348 + $0x4c] sm:$0xf]
          %v455 = vld [vmem:[%s348 + $0x50] sm:$0xf]
          %v456 = vld [vmem:[%s348 + $0x54] sm:$0xf]
          %v457 = vld [vmem:[%s348 + $0x58] sm:$0xf]
          %v458 = vld [vmem:[%s348 + $0x5c] sm:$0xf]
          %v459 = vld [vmem:[%s348 + $0x60] sm:$0xf]
          %v460 = vld [vmem:[%s348 + $0x64] sm:$0xf]
          %v461 = vld [vmem:[%s348 + $0x68] sm:$0xf]
          %v462 = vld [vmem:[%s348 + $0x6c] sm:$0xf]
          %v463 = vld [vmem:[%s348 + $0x70] sm:$0xf]
          %v464 = vld [vmem:[%s348 + $0x74] sm:$0xf]
          %v465 = vld [vmem:[%s348 + $0x78] sm:$0xf]
          %v466 = vld [vmem:[%s348 + $0x7c] sm:$0xf]
          %v467 = vld [vmem:[#allocation7] sm:$0xf]
          %v468 = vld [vmem:[#allocation7 + $0x4] sm:$0xf]
          %v469 = vld [vmem:[#allocation7 + $0x8] sm:$0xf]
          %v470 = vld [vmem:[#allocation7 + $0xc] sm:$0xf]
          %v471 = vld [vmem:[#allocation7 + $0x10] sm:$0xf]
          %v472 = vld [vmem:[#allocation7 + $0x14] sm:$0xf]
          %v473 = vld [vmem:[#allocation7 + $0x18] sm:$0xf]
          %v474 = vld [vmem:[#allocation7 + $0x1c] sm:$0xf]
          %v475 = vld [vmem:[#allocation7 + $0x20] sm:$0xf]
          %v476 = vld [vmem:[#allocation7 + $0x24] sm:$0xf]
          %v477 = vld [vmem:[#allocation7 + $0x28] sm:$0xf]
          %v478 = vld [vmem:[#allocation7 + $0x2c] sm:$0xf]
          %v479 = vld [vmem:[#allocation7 + $0x30] sm:$0xf]
          %v480 = vld [vmem:[#allocation7 + $0x34] sm:$0xf]
          %v481 = vld [vmem:[#allocation7 + $0x38] sm:$0xf]
          %v482 = vld [vmem:[#allocation7 + $0x3c] sm:$0xf]
          %v515 = vunpack.c.l.b16 %v435
          %v516 = vunpack.c.l.b16 %v436
          %v517 = vunpack.c.l.b16 %v437
          %v518 = vunpack.c.l.b16 %v438
          %v519 = vunpack.c.l.b16 %v439
          %v520 = vunpack.c.l.b16 %v440
          %v521 = vunpack.c.l.b16 %v441
          %v522 = vunpack.c.l.b16 %v442
          %v523 = vunpack.c.l.b16 %v443
          %v524 = vunpack.c.l.b16 %v444
          %v525 = vunpack.c.l.b16 %v445
          %v526 = vunpack.c.l.b16 %v446
          %v527 = vunpack.c.l.b16 %v447
          %v528 = vunpack.c.l.b16 %v448
          %v529 = vunpack.c.l.b16 %v449
          %v530 = vunpack.c.l.b16 %v450
          %v531 = vunpack.c.l.b16 %v451
          %v532 = vunpack.c.l.b16 %v452
          %v533 = vunpack.c.l.b16 %v453
          %v534 = vunpack.c.l.b16 %v454
          %v535 = vunpack.c.l.b16 %v455
          %v536 = vunpack.c.l.b16 %v456
          %v537 = vunpack.c.l.b16 %v457
          %v538 = vunpack.c.l.b16 %v458
          %v539 = vunpack.c.l.b16 %v459
          %v540 = vunpack.c.l.b16 %v460
          %v541 = vunpack.c.l.b16 %v461
          %v542 = vunpack.c.l.b16 %v462
          %v543 = vunpack.c.l.b16 %v463
          %v544 = vunpack.c.l.b16 %v464
          %v545 = vunpack.c.l.b16 %v465
          %v546 = vunpack.c.l.b16 %v466
          %v547 = vpack.c.b16 %v516, %v515
          %v548 = vpack.c.b16 %v518, %v517
          %v549 = vpack.c.b16 %v520, %v519
          %v550 = vpack.c.b16 %v522, %v521
          %v551 = vpack.c.b16 %v524, %v523
          %v552 = vpack.c.b16 %v526, %v525
          %v553 = vpack.c.b16 %v528, %v527
          %v554 = vpack.c.b16 %v530, %v529
          %v555 = vpack.c.b16 %v532, %v531
          %v556 = vpack.c.b16 %v534, %v533
          %v557 = vpack.c.b16 %v536, %v535
          %v558 = vpack.c.b16 %v538, %v537
          %v559 = vpack.c.b16 %v540, %v539
          %v560 = vpack.c.b16 %v542, %v541
          %v561 = vpack.c.b16 %v544, %v543
          %v562 = vpack.c.b16 %v546, %v545
          %v595 = vunpack.c.l.b16 %v467
          %v596 = vunpack.c.l.b16 %v468
          %v597 = vunpack.c.l.b16 %v469
          %v598 = vunpack.c.l.b16 %v470
          %v599 = vunpack.c.l.b16 %v471
          %v600 = vunpack.c.l.b16 %v472
          %v601 = vunpack.c.l.b16 %v473
          %v602 = vunpack.c.l.b16 %v474
          %v603 = vunpack.c.l.b16 %v475
          %v604 = vunpack.c.l.b16 %v476
          %v605 = vunpack.c.l.b16 %v477
          %v606 = vunpack.c.l.b16 %v478
          %v607 = vunpack.c.l.b16 %v479
          %v608 = vunpack.c.l.b16 %v480
          %v609 = vunpack.c.l.b16 %v481
          %v610 = vunpack.c.l.b16 %v482
          %v611 = vpack.c.b16 %v596, %v595
          %v612 = vpack.c.b16 %v598, %v597
          %v613 = vpack.c.b16 %v600, %v599
          %v614 = vpack.c.b16 %v602, %v601
          %v615 = vpack.c.b16 %v604, %v603
          %v616 = vpack.c.b16 %v606, %v605
          %v617 = vpack.c.b16 %v608, %v607
          %v618 = vpack.c.b16 %v610, %v609
          %627 = vmatprep.subr.bf16.mxu0 0
          %628 = vmatpush1.bf16.msra.mxu0 %v611
          %629 = vmatprep.subr.bf16.mxu0 0
          %630 = vmatpush1.bf16.msra.mxu0 %v612
          %631 = vmatprep.subr.bf16.mxu0 0
          %632 = vmatpush1.bf16.msra.mxu0 %v613
          %633 = vmatprep.subr.bf16.mxu0 0
          %634 = vmatpush1.bf16.msra.mxu0 %v614
          %635 = vmatprep.subr.bf16.mxu0 0
          %636 = vmatpush1.bf16.msra.mxu0 %v615
          %637 = vmatprep.subr.bf16.mxu0 0
          %638 = vmatpush1.bf16.msra.mxu0 %v616
          %639 = vmatprep.subr.bf16.mxu0 0
          %640 = vmatpush1.bf16.msra.mxu0 %v617
          %641 = vmatprep.subr.bf16.mxu0 0
          %642 = vmatpush1.bf16.msra.mxu0 %v618
          %643 = vmatprep.subr.bf16.mxu0 0
          %644 = vmatpush1.bf16.msra.mxu0 0
          %645 = vmatprep.subr.bf16.mxu0 0
          %646 = vmatpush1.bf16.msra.mxu0 0
          %647 = vmatprep.subr.bf16.mxu0 0
          %648 = vmatpush1.bf16.msra.mxu0 0
          %649 = vmatprep.subr.bf16.mxu0 0
          %650 = vmatpush1.bf16.msra.mxu0 0
          %651 = vmatprep.subr.bf16.mxu0 0
          %652 = vmatpush1.bf16.msra.mxu0 0
          %653 = vmatprep.subr.bf16.mxu0 0
          %654 = vmatpush1.bf16.msra.mxu0 0
          %655 = vmatprep.subr.bf16.mxu0 0
          %656 = vmatpush1.bf16.msra.mxu0 0
          %657 = vmatprep.subr.bf16.mxu0 0
          %658 = vmatpush1.bf16.msra.mxu0 0
          %659 = vmatprep.mubr.bf16.mxu0 0
          %660 = vmatmul.mubr.bf16.gmra.mrb[0].mxu0 %v547
          %v661 = vpop.f32.mrb[0].mxu0
          %v662 = vadd.f32 0.0, %v661
          %v663 = vpop.f32.mrb[0].mxu0
          %v664 = vpop.f32.mrb[0].mxu0
          %v665 = vadd.f32 0.0, %v664
          %v666 = vpop.f32.mrb[0].mxu0
          %667 = vmatprep.mubr.bf16.mxu0 0
          %668 = vmatmul.mubr.bf16.gmra.mrb[0].mxu0 %v548
          %v669 = vpop.f32.mrb[0].mxu0
          %v670 = vadd.f32 0.0, %v669
          %v671 = vpop.f32.mrb[0].mxu0
          %v672 = vpop.f32.mrb[0].mxu0
          %v673 = vadd.f32 0.0, %v672
          %v674 = vpop.f32.mrb[0].mxu0
          %675 = vmatprep.mubr.bf16.mxu0 0
          %676 = vmatmul.mubr.bf16.gmra.mrb[0].mxu0 %v549
          %v677 = vpop.f32.mrb[0].mxu0
          %v678 = vadd.f32 0.0, %v677
          %v679 = vpop.f32.mrb[0].mxu0
          %v680 = vpop.f32.mrb[0].mxu0
          %v681 = vadd.f32 0.0, %v680
          %v682 = vpop.f32.mrb[0].mxu0
          %683 = vmatprep.mubr.bf16.mxu0 0
          %684 = vmatmul.mubr.bf16.gmra.mrb[0].mxu0 %v550
          %v685 = vpop.f32.mrb[0].mxu0
          %v686 = vadd.f32 0.0, %v685
          %v687 = vpop.f32.mrb[0].mxu0
          %v688 = vpop.f32.mrb[0].mxu0
          %v689 = vadd.f32 0.0, %v688
          %v690 = vpop.f32.mrb[0].mxu0
          %691 = vmatprep.mubr.bf16.mxu0 0
          %692 = vmatmul.mubr.bf16.gmra.mrb[0].mxu0 %v551
          %v693 = vpop.f32.mrb[0].mxu0
          %v694 = vadd.f32 0.0, %v693
          %v695 = vpop.f32.mrb[0].mxu0
          %v696 = vpop.f32.mrb[0].mxu0
          %v697 = vadd.f32 0.0, %v696
          %v698 = vpop.f32.mrb[0].mxu0
          %699 = vmatprep.mubr.bf16.mxu0 0
          %700 = vmatmul.mubr.bf16.gmra.mrb[0].mxu0 %v552
          %v701 = vpop.f32.mrb[0].mxu0
          %v702 = vadd.f32 0.0, %v701
          %v703 = vpop.f32.mrb[0].mxu0
          %v704 = vpop.f32.mrb[0].mxu0
          %v705 = vadd.f32 0.0, %v704
          %v706 = vpop.f32.mrb[0].mxu0
          %707 = vmatprep.mubr.bf16.mxu0 0
          %708 = vmatmul.mubr.bf16.gmra.mrb[0].mxu0 %v553
          %v709 = vpop.f32.mrb[0].mxu0
          %v710 = vadd.f32 0.0, %v709
          %v711 = vpop.f32.mrb[0].mxu0
          %v712 = vpop.f32.mrb[0].mxu0
          %v713 = vadd.f32 0.0, %v712
          %v714 = vpop.f32.mrb[0].mxu0
          %715 = vmatprep.mubr.bf16.mxu0 0
          %716 = vmatmul.mubr.bf16.gmra.mrb[0].mxu0 %v554
          %v717 = vpop.f32.mrb[0].mxu0
          %v718 = vadd.f32 0.0, %v717
          %v719 = vpop.f32.mrb[0].mxu0
          %v720 = vpop.f32.mrb[0].mxu0
          %v721 = vadd.f32 0.0, %v720
          %v722 = vpop.f32.mrb[0].mxu0
          %723 = vmatprep.mubr.bf16.mxu0 0
          %724 = vmatmul.mubr.bf16.gmra.mrb[0].mxu0 %v555
          %v725 = vpop.f32.mrb[0].mxu0
          %v726 = vadd.f32 0.0, %v725
          %v727 = vpop.f32.mrb[0].mxu0
          %v728 = vpop.f32.mrb[0].mxu0
          %v729 = vadd.f32 0.0, %v728
          %v730 = vpop.f32.mrb[0].mxu0
          %731 = vmatprep.mubr.bf16.mxu0 0
          %732 = vmatmul.mubr.bf16.gmra.mrb[0].mxu0 %v556
          %v733 = vpop.f32.mrb[0].mxu0
          %v734 = vadd.f32 0.0, %v733
          %v735 = vpop.f32.mrb[0].mxu0
          %v736 = vpop.f32.mrb[0].mxu0
          %v737 = vadd.f32 0.0, %v736
          %v738 = vpop.f32.mrb[0].mxu0
          %739 = vmatprep.mubr.bf16.mxu0 0
          %740 = vmatmul.mubr.bf16.gmra.mrb[0].mxu0 %v557
          %v741 = vpop.f32.mrb[0].mxu0
          %v742 = vadd.f32 0.0, %v741
          %v743 = vpop.f32.mrb[0].mxu0
          %v744 = vpop.f32.mrb[0].mxu0
          %v745 = vadd.f32 0.0, %v744
          %v746 = vpop.f32.mrb[0].mxu0
          %747 = vmatprep.mubr.bf16.mxu0 0
          %748 = vmatmul.mubr.bf16.gmra.mrb[0].mxu0 %v558
          %v749 = vpop.f32.mrb[0].mxu0
          %v750 = vadd.f32 0.0, %v749
          %v751 = vpop.f32.mrb[0].mxu0
          %v752 = vpop.f32.mrb[0].mxu0
          %v753 = vadd.f32 0.0, %v752
          %v754 = vpop.f32.mrb[0].mxu0
          %755 = vmatprep.mubr.bf16.mxu0 0
          %756 = vmatmul.mubr.bf16.gmra.mrb[0].mxu0 %v559
          %v757 = vpop.f32.mrb[0].mxu0
          %v758 = vadd.f32 0.0, %v757
          %v759 = vpop.f32.mrb[0].mxu0
          %v760 = vpop.f32.mrb[0].mxu0
          %v761 = vadd.f32 0.0, %v760
          %v762 = vpop.f32.mrb[0].mxu0
          %763 = vmatprep.mubr.bf16.mxu0 0
          %764 = vmatmul.mubr.bf16.gmra.mrb[0].mxu0 %v560
          %v765 = vpop.f32.mrb[0].mxu0
          %v766 = vadd.f32 0.0, %v765
          %v767 = vpop.f32.mrb[0].mxu0
          %v768 = vpop.f32.mrb[0].mxu0
          %v769 = vadd.f32 0.0, %v768
          %v770 = vpop.f32.mrb[0].mxu0
          %771 = vmatprep.mubr.bf16.mxu0 0
          %772 = vmatmul.mubr.bf16.gmra.mrb[0].mxu0 %v561
          %v773 = vpop.f32.mrb[0].mxu0
          %v774 = vadd.f32 0.0, %v773
          %v775 = vpop.f32.mrb[0].mxu0
          %v776 = vpop.f32.mrb[0].mxu0
          %v777 = vadd.f32 0.0, %v776
          %v778 = vpop.f32.mrb[0].mxu0
          %779 = vmatprep.mubr.bf16.mxu0 0
          %780 = vmatmul.mubr.bf16.gmra.mrb[0].mxu0 %v562
          %v781 = vpop.f32.mrb[0].mxu0
          %v782 = vadd.f32 0.0, %v781
          %v783 = vpop.f32.mrb[0].mxu0
          %v784 = vpop.f32.mrb[0].mxu0
          %v785 = vadd.f32 0.0, %v784
          %v786 = vpop.f32.mrb[0].mxu0
          %787 = vdwg.mxu0
          %v788 = vpack.c.bf16 %v665, %v662
          %v789 = vpack.c.bf16 %v673, %v670
          %v790 = vpack.c.bf16 %v681, %v678
          %v791 = vpack.c.bf16 %v689, %v686
          %v792 = vpack.c.bf16 %v697, %v694
          %v793 = vpack.c.bf16 %v705, %v702
          %v794 = vpack.c.bf16 %v713, %v710
          %v795 = vpack.c.bf16 %v721, %v718
          %v796 = vpack.c.bf16 %v729, %v726
          %v797 = vpack.c.bf16 %v737, %v734
          %v798 = vpack.c.bf16 %v745, %v742
          %v799 = vpack.c.bf16 %v753, %v750
          %v800 = vpack.c.bf16 %v761, %v758
          %v801 = vpack.c.bf16 %v769, %v766
          %v802 = vpack.c.bf16 %v777, %v774
          %v803 = vpack.c.bf16 %v785, %v782
          %s804 = sshra.s32 %s430, 4
          %s805 = sand.u32 %s430, 15
          %s806 = smul.addr %s804, 8
          %s807 = scalar_lea.vmem [#allocation2], %s806
          %808 = vst [vmem:[%s807] sm:$0xff] %v788
          %809 = vst [vmem:[%s807 + $0x8] sm:$0xff] %v789
          %810 = vst [vmem:[%s807 + $0x10] sm:$0xff] %v790
          %811 = vst [vmem:[%s807 + $0x18] sm:$0xff] %v791
          %812 = vst [vmem:[%s807 + $0x20] sm:$0xff] %v792
          %813 = vst [vmem:[%s807 + $0x28] sm:$0xff] %v793
          %814 = vst [vmem:[%s807 + $0x30] sm:$0xff] %v794
          %815 = vst [vmem:[%s807 + $0x38] sm:$0xff] %v795
          %816 = vst [vmem:[%s807 + $0x40] sm:$0xff] %v796
          %817 = vst [vmem:[%s807 + $0x48] sm:$0xff] %v797
          %818 = vst [vmem:[%s807 + $0x50] sm:$0xff] %v798
          %819 = vst [vmem:[%s807 + $0x58] sm:$0xff] %v799
          %820 = vst [vmem:[%s807 + $0x60] sm:$0xff] %v800
          %821 = vst [vmem:[%s807 + $0x68] sm:$0xff] %v801
          %822 = vst [vmem:[%s807 + $0x70] sm:$0xff] %v802
          %823 = vst [vmem:[%s807 + $0x78] sm:$0xff] %v803
        $region64: #{tpu_custom_call.1} parent=47 // pred_fallthru
          _
        %p824 = scmp.eq.s32.totalorder %s29, 1
        // Predicated region
        $region65: #{tpu_custom_call.1} parent=47 // pred_check
          %p825 = pneg %p824
        $region66: #{tpu_custom_call.1} parent=47 // pred_check_branch
          %827 = sbr.rel (%p825) target = $region68
        $region67: #{tpu_custom_call.1} parent=47 // pred_region
          %v828 = vld [vmem:[%s412] sm:$0xff]
          %v829 = vld [vmem:[%s412 + $0x8] sm:$0xff]
          %v830 = vld [vmem:[%s412 + $0x10] sm:$0xff]
          %v831 = vld [vmem:[%s412 + $0x18] sm:$0xff]
          %v832 = vld [vmem:[%s412 + $0x20] sm:$0xff]
          %v833 = vld [vmem:[%s412 + $0x28] sm:$0xff]
          %v834 = vld [vmem:[%s412 + $0x30] sm:$0xff]
          %v835 = vld [vmem:[%s412 + $0x38] sm:$0xff]
          %v836 = vld [vmem:[%s412 + $0x40] sm:$0xff]
          %v837 = vld [vmem:[%s412 + $0x48] sm:$0xff]
          %v838 = vld [vmem:[%s412 + $0x50] sm:$0xff]
          %v839 = vld [vmem:[%s412 + $0x58] sm:$0xff]
          %v840 = vld [vmem:[%s412 + $0x60] sm:$0xff]
          %v841 = vld [vmem:[%s412 + $0x68] sm:$0xff]
          %v842 = vld [vmem:[%s412 + $0x70] sm:$0xff]
          %v843 = vld [vmem:[%s412 + $0x78] sm:$0xff]
          %v844 = vld [vmem:[%s412 + $0x80] sm:$0xff]
          %v845 = vld [vmem:[%s412 + $0x88] sm:$0xff]
          %v846 = vld [vmem:[%s412 + $0x90] sm:$0xff]
          %v847 = vld [vmem:[%s412 + $0x98] sm:$0xff]
          %v848 = vld [vmem:[%s412 + $0xa0] sm:$0xff]
          %v849 = vld [vmem:[%s412 + $0xa8] sm:$0xff]
          %v850 = vld [vmem:[%s412 + $0xb0] sm:$0xff]
          %v851 = vld [vmem:[%s412 + $0xb8] sm:$0xff]
          %v852 = vld [vmem:[%s412 + $0xc0] sm:$0xff]
          %v853 = vld [vmem:[%s412 + $0xc8] sm:$0xff]
          %v854 = vld [vmem:[%s412 + $0xd0] sm:$0xff]
          %v855 = vld [vmem:[%s412 + $0xd8] sm:$0xff]
          %v856 = vld [vmem:[%s412 + $0xe0] sm:$0xff]
          %v857 = vld [vmem:[%s412 + $0xe8] sm:$0xff]
          %v858 = vld [vmem:[%s412 + $0xf0] sm:$0xff]
          %v859 = vld [vmem:[%s412 + $0xf8] sm:$0xff]
          %v860 = vld [vmem:[#allocation2] sm:$0xff]
          %v861 = vld [vmem:[#allocation2 + $0x8] sm:$0xff]
          %v862 = vld [vmem:[#allocation2 + $0x10] sm:$0xff]
          %v863 = vld [vmem:[#allocation2 + $0x18] sm:$0xff]
          %v864 = vld [vmem:[#allocation2 + $0x20] sm:$0xff]
          %v865 = vld [vmem:[#allocation2 + $0x28] sm:$0xff]
          %v866 = vld [vmem:[#allocation2 + $0x30] sm:$0xff]
          %v867 = vld [vmem:[#allocation2 + $0x38] sm:$0xff]
          %v868 = vld [vmem:[#allocation2 + $0x40] sm:$0xff]
          %v869 = vld [vmem:[#allocation2 + $0x48] sm:$0xff]
          %v870 = vld [vmem:[#allocation2 + $0x50] sm:$0xff]
          %v871 = vld [vmem:[#allocation2 + $0x58] sm:$0xff]
          %v872 = vld [vmem:[#allocation2 + $0x60] sm:$0xff]
          %v873 = vld [vmem:[#allocation2 + $0x68] sm:$0xff]
          %v874 = vld [vmem:[#allocation2 + $0x70] sm:$0xff]
          %v875 = vld [vmem:[#allocation2 + $0x78] sm:$0xff]
          %v908 = vunpack.c.l.b16 %v828
          %v909 = vunpack.c.h.b16 %v828
          %v910 = vunpack.c.l.b16 %v829
          %v911 = vunpack.c.h.b16 %v829
          %v912 = vunpack.c.l.b16 %v830
          %v913 = vunpack.c.h.b16 %v830
          %v914 = vunpack.c.l.b16 %v831
          %v915 = vunpack.c.h.b16 %v831
          %v916 = vunpack.c.l.b16 %v832
          %v917 = vunpack.c.h.b16 %v832
          %v918 = vunpack.c.l.b16 %v833
          %v919 = vunpack.c.h.b16 %v833
          %v920 = vunpack.c.l.b16 %v834
          %v921 = vunpack.c.h.b16 %v834
          %v922 = vunpack.c.l.b16 %v835
          %v923 = vunpack.c.h.b16 %v835
          %v924 = vunpack.c.l.b16 %v836
          %v925 = vunpack.c.h.b16 %v836
          %v926 = vunpack.c.l.b16 %v837
          %v927 = vunpack.c.h.b16 %v837
          %v928 = vunpack.c.l.b16 %v838
          %v929 = vunpack.c.h.b16 %v838
          %v930 = vunpack.c.l.b16 %v839
          %v931 = vunpack.c.h.b16 %v839
          %v932 = vunpack.c.l.b16 %v840
          %v933 = vunpack.c.h.b16 %v840
          %v934 = vunpack.c.l.b16 %v841
          %v935 = vunpack.c.h.b16 %v841
          %v936 = vunpack.c.l.b16 %v842
          %v937 = vunpack.c.h.b16 %v842
          %v938 = vunpack.c.l.b16 %v843
          %v939 = vunpack.c.h.b16 %v843
          %v940 = vunpack.c.l.b16 %v844
          %v941 = vunpack.c.h.b16 %v844
          %v942 = vunpack.c.l.b16 %v845
          %v943 = vunpack.c.h.b16 %v845
          %v944 = vunpack.c.l.b16 %v846
          %v945 = vunpack.c.h.b16 %v846
          %v946 = vunpack.c.l.b16 %v847
          %v947 = vunpack.c.h.b16 %v847
          %v948 = vunpack.c.l.b16 %v848
          %v949 = vunpack.c.h.b16 %v848
          %v950 = vunpack.c.l.b16 %v849
          %v951 = vunpack.c.h.b16 %v849
          %v952 = vunpack.c.l.b16 %v850
          %v953 = vunpack.c.h.b16 %v850
          %v954 = vunpack.c.l.b16 %v851
          %v955 = vunpack.c.h.b16 %v851
          %v956 = vunpack.c.l.b16 %v852
          %v957 = vunpack.c.h.b16 %v852
          %v958 = vunpack.c.l.b16 %v853
          %v959 = vunpack.c.h.b16 %v853
          %v960 = vunpack.c.l.b16 %v854
          %v961 = vunpack.c.h.b16 %v854
          %v962 = vunpack.c.l.b16 %v855
          %v963 = vunpack.c.h.b16 %v855
          %v964 = vunpack.c.l.b16 %v856
          %v965 = vunpack.c.h.b16 %v856
          %v966 = vunpack.c.l.b16 %v857
          %v967 = vunpack.c.h.b16 %v857
          %v968 = vunpack.c.l.b16 %v858
          %v969 = vunpack.c.h.b16 %v858
          %v970 = vunpack.c.l.b16 %v859
          %v971 = vunpack.c.h.b16 %v859
          %v972 = vpack.c.b16 %v910, %v908
          %v973 = vpack.c.b16 %v911, %v909
          %v974 = vpack.c.b16 %v914, %v912
          %v975 = vpack.c.b16 %v915, %v913
          %v976 = vpack.c.b16 %v918, %v916
          %v977 = vpack.c.b16 %v919, %v917
          %v978 = vpack.c.b16 %v922, %v920
          %v979 = vpack.c.b16 %v923, %v921
          %v980 = vpack.c.b16 %v926, %v924
          %v981 = vpack.c.b16 %v927, %v925
          %v982 = vpack.c.b16 %v930, %v928
          %v983 = vpack.c.b16 %v931, %v929
          %v984 = vpack.c.b16 %v934, %v932
          %v985 = vpack.c.b16 %v935, %v933
          %v986 = vpack.c.b16 %v938, %v936
          %v987 = vpack.c.b16 %v939, %v937
          %v988 = vpack.c.b16 %v942, %v940
          %v989 = vpack.c.b16 %v943, %v941
          %v990 = vpack.c.b16 %v946, %v944
          %v991 = vpack.c.b16 %v947, %v945
          %v992 = vpack.c.b16 %v950, %v948
          %v993 = vpack.c.b16 %v951, %v949
          %v994 = vpack.c.b16 %v954, %v952
          %v995 = vpack.c.b16 %v955, %v953
          %v996 = vpack.c.b16 %v958, %v956
          %v997 = vpack.c.b16 %v959, %v957
          %v998 = vpack.c.b16 %v962, %v960
          %v999 = vpack.c.b16 %v963, %v961
          %v1000 = vpack.c.b16 %v966, %v964
          %v1001 = vpack.c.b16 %v967, %v965
          %v1002 = vpack.c.b16 %v970, %v968
          %v1003 = vpack.c.b16 %v971, %v969
          %1036 = vmatprep.subr.bf16.mxu0 0
          %1037 = vmatpush1.bf16.msra.mxu0 %v860
          %1038 = vmatprep.subr.bf16.mxu0 0
          %1039 = vmatpush1.bf16.msra.mxu0 %v861
          %1040 = vmatprep.subr.bf16.mxu0 0
          %1041 = vmatpush1.bf16.msra.mxu0 %v862
          %1042 = vmatprep.subr.bf16.mxu0 0
          %1043 = vmatpush1.bf16.msra.mxu0 %v863
          %1044 = vmatprep.subr.bf16.mxu0 0
          %1045 = vmatpush1.bf16.msra.mxu0 %v864
          %1046 = vmatprep.subr.bf16.mxu0 0
          %1047 = vmatpush1.bf16.msra.mxu0 %v865
          %1048 = vmatprep.subr.bf16.mxu0 0
          %1049 = vmatpush1.bf16.msra.mxu0 %v866
          %1050 = vmatprep.subr.bf16.mxu0 0
          %1051 = vmatpush1.bf16.msra.mxu0 %v867
          %1052 = vmatprep.subr.bf16.mxu0 0
          %1053 = vmatpush1.bf16.msra.mxu0 %v868
          %1054 = vmatprep.subr.bf16.mxu0 0
          %1055 = vmatpush1.bf16.msra.mxu0 %v869
          %1056 = vmatprep.subr.bf16.mxu0 0
          %1057 = vmatpush1.bf16.msra.mxu0 %v870
          %1058 = vmatprep.subr.bf16.mxu0 0
          %1059 = vmatpush1.bf16.msra.mxu0 %v871
          %1060 = vmatprep.subr.bf16.mxu0 0
          %1061 = vmatpush1.bf16.msra.mxu0 %v872
          %1062 = vmatprep.subr.bf16.mxu0 0
          %1063 = vmatpush1.bf16.msra.mxu0 %v873
          %1064 = vmatprep.subr.bf16.mxu0 0
          %1065 = vmatpush1.bf16.msra.mxu0 %v874
          %1066 = vmatprep.subr.bf16.mxu0 0
          %1067 = vmatpush1.bf16.msra.mxu0 %v875
          %1068 = vmatprep.mubr.bf16.mxu0 %v973
          %1069 = vmatmul.mubr.bf16.gmra.mrb[0].mxu0 %v972
          %v1070 = vpop.f32.mrb[0].mxu0
          %v1071 = vadd.f32 0.0, %v1070
          %v1072 = vpop.f32.mrb[0].mxu0
          %v1073 = vpop.f32.mrb[0].mxu0
          %v1074 = vadd.f32 0.0, %v1073
          %v1075 = vpop.f32.mrb[0].mxu0
          %1076 = vmatprep.mubr.bf16.mxu0 %v975
          %1077 = vmatmul.mubr.bf16.gmra.mrb[0].mxu0 %v974
          %v1078 = vpop.f32.mrb[0].mxu0
          %v1079 = vadd.f32 0.0, %v1078
          %v1080 = vpop.f32.mrb[0].mxu0
          %v1081 = vpop.f32.mrb[0].mxu0
          %v1082 = vadd.f32 0.0, %v1081
          %v1083 = vpop.f32.mrb[0].mxu0
          %1084 = vmatprep.mubr.bf16.mxu0 %v977
          %1085 = vmatmul.mubr.bf16.gmra.mrb[0].mxu0 %v976
          %v1086 = vpop.f32.mrb[0].mxu0
          %v1087 = vadd.f32 0.0, %v1086
          %v1088 = vpop.f32.mrb[0].mxu0
          %v1089 = vpop.f32.mrb[0].mxu0
          %v1090 = vadd.f32 0.0, %v1089
          %v1091 = vpop.f32.mrb[0].mxu0
          %1092 = vmatprep.mubr.bf16.mxu0 %v979
          %1093 = vmatmul.mubr.bf16.gmra.mrb[0].mxu0 %v978
          %v1094 = vpop.f32.mrb[0].mxu0
          %v1095 = vadd.f32 0.0, %v1094
          %v1096 = vpop.f32.mrb[0].mxu0
          %v1097 = vpop.f32.mrb[0].mxu0
          %v1098 = vadd.f32 0.0, %v1097
          %v1099 = vpop.f32.mrb[0].mxu0
          %1100 = vmatprep.mubr.bf16.mxu0 %v981
          %1101 = vmatmul.mubr.bf16.gmra.mrb[0].mxu0 %v980
          %v1102 = vpop.f32.mrb[0].mxu0
          %v1103 = vadd.f32 0.0, %v1102
          %v1104 = vpop.f32.mrb[0].mxu0
          %v1105 = vpop.f32.mrb[0].mxu0
          %v1106 = vadd.f32 0.0, %v1105
          %v1107 = vpop.f32.mrb[0].mxu0
          %1108 = vmatprep.mubr.bf16.mxu0 %v983
          %1109 = vmatmul.mubr.bf16.gmra.mrb[0].mxu0 %v982
          %v1110 = vpop.f32.mrb[0].mxu0
          %v1111 = vadd.f32 0.0, %v1110
          %v1112 = vpop.f32.mrb[0].mxu0
          %v1113 = vpop.f32.mrb[0].mxu0
          %v1114 = vadd.f32 0.0, %v1113
          %v1115 = vpop.f32.mrb[0].mxu0
          %1116 = vmatprep.mubr.bf16.mxu0 %v985
          %1117 = vmatmul.mubr.bf16.gmra.mrb[0].mxu0 %v984
          %v1118 = vpop.f32.mrb[0].mxu0
          %v1119 = vadd.f32 0.0, %v1118
          %v1120 = vpop.f32.mrb[0].mxu0
          %v1121 = vpop.f32.mrb[0].mxu0
          %v1122 = vadd.f32 0.0, %v1121
          %v1123 = vpop.f32.mrb[0].mxu0
          %1124 = vmatprep.mubr.bf16.mxu0 %v987
          %1125 = vmatmul.mubr.bf16.gmra.mrb[0].mxu0 %v986
          %v1126 = vpop.f32.mrb[0].mxu0
          %v1127 = vadd.f32 0.0, %v1126
          %v1128 = vpop.f32.mrb[0].mxu0
          %v1129 = vpop.f32.mrb[0].mxu0
          %v1130 = vadd.f32 0.0, %v1129
          %v1131 = vpop.f32.mrb[0].mxu0
          %1132 = vmatprep.mubr.bf16.mxu0 %v989
          %1133 = vmatmul.mubr.bf16.gmra.mrb[0].mxu0 %v988
          %v1134 = vpop.f32.mrb[0].mxu0
          %v1135 = vadd.f32 0.0, %v1134
          %v1136 = vpop.f32.mrb[0].mxu0
          %v1137 = vpop.f32.mrb[0].mxu0
          %v1138 = vadd.f32 0.0, %v1137
          %v1139 = vpop.f32.mrb[0].mxu0
          %1140 = vmatprep.mubr.bf16.mxu0 %v991
          %1141 = vmatmul.mubr.bf16.gmra.mrb[0].mxu0 %v990
          %v1142 = vpop.f32.mrb[0].mxu0
          %v1143 = vadd.f32 0.0, %v1142
          %v1144 = vpop.f32.mrb[0].mxu0
          %v1145 = vpop.f32.mrb[0].mxu0
          %v1146 = vadd.f32 0.0, %v1145
          %v1147 = vpop.f32.mrb[0].mxu0
          %1148 = vmatprep.mubr.bf16.mxu0 %v993
          %1149 = vmatmul.mubr.bf16.gmra.mrb[0].mxu0 %v992
          %v1150 = vpop.f32.mrb[0].mxu0
          %v1151 = vadd.f32 0.0, %v1150
          %v1152 = vpop.f32.mrb[0].mxu0
          %v1153 = vpop.f32.mrb[0].mxu0
          %v1154 = vadd.f32 0.0, %v1153
          %v1155 = vpop.f32.mrb[0].mxu0
          %1156 = vmatprep.mubr.bf16.mxu0 %v995
          %1157 = vmatmul.mubr.bf16.gmra.mrb[0].mxu0 %v994
          %v1158 = vpop.f32.mrb[0].mxu0
          %v1159 = vadd.f32 0.0, %v1158
          %v1160 = vpop.f32.mrb[0].mxu0
          %v1161 = vpop.f32.mrb[0].mxu0
          %v1162 = vadd.f32 0.0, %v1161
          %v1163 = vpop.f32.mrb[0].mxu0
          %1164 = vmatprep.mubr.bf16.mxu0 %v997
          %1165 = vmatmul.mubr.bf16.gmra.mrb[0].mxu0 %v996
          %v1166 = vpop.f32.mrb[0].mxu0
          %v1167 = vadd.f32 0.0, %v1166
          %v1168 = vpop.f32.mrb[0].mxu0
          %v1169 = vpop.f32.mrb[0].mxu0
          %v1170 = vadd.f32 0.0, %v1169
          %v1171 = vpop.f32.mrb[0].mxu0
          %1172 = vmatprep.mubr.bf16.mxu0 %v999
          %1173 = vmatmul.mubr.bf16.gmra.mrb[0].mxu0 %v998
          %v1174 = vpop.f32.mrb[0].mxu0
          %v1175 = vadd.f32 0.0, %v1174
          %v1176 = vpop.f32.mrb[0].mxu0
          %v1177 = vpop.f32.mrb[0].mxu0
          %v1178 = vadd.f32 0.0, %v1177
          %v1179 = vpop.f32.mrb[0].mxu0
          %1180 = vmatprep.mubr.bf16.mxu0 %v1001
          %1181 = vmatmul.mubr.bf16.gmra.mrb[0].mxu0 %v1000
          %v1182 = vpop.f32.mrb[0].mxu0
          %v1183 = vadd.f32 0.0, %v1182
          %v1184 = vpop.f32.mrb[0].mxu0
          %v1185 = vpop.f32.mrb[0].mxu0
          %v1186 = vadd.f32 0.0, %v1185
          %v1187 = vpop.f32.mrb[0].mxu0
          %1188 = vmatprep.mubr.bf16.mxu0 %v1003
          %1189 = vmatmul.mubr.bf16.gmra.mrb[0].mxu0 %v1002
          %v1190 = vpop.f32.mrb[0].mxu0
          %v1191 = vadd.f32 0.0, %v1190
          %v1192 = vpop.f32.mrb[0].mxu0
          %v1193 = vpop.f32.mrb[0].mxu0
          %v1194 = vadd.f32 0.0, %v1193
          %v1195 = vpop.f32.mrb[0].mxu0
          %1196 = vdwg.mxu0
          %v1197 = vld [vmem:[%s422] sm:$0xff]
          %v1198 = vld [vmem:[%s422 + $0x8] sm:$0xff]
          %v1199 = vld [vmem:[%s422 + $0x10] sm:$0xff]
          %v1200 = vld [vmem:[%s422 + $0x18] sm:$0xff]
          %v1201 = vld [vmem:[%s422 + $0x20] sm:$0xff]
          %v1202 = vld [vmem:[%s422 + $0x28] sm:$0xff]
          %v1203 = vld [vmem:[%s422 + $0x30] sm:$0xff]
          %v1204 = vld [vmem:[%s422 + $0x38] sm:$0xff]
          %v1205 = vld [vmem:[%s422 + $0x40] sm:$0xff]
          %v1206 = vld [vmem:[%s422 + $0x48] sm:$0xff]
          %v1207 = vld [vmem:[%s422 + $0x50] sm:$0xff]
          %v1208 = vld [vmem:[%s422 + $0x58] sm:$0xff]
          %v1209 = vld [vmem:[%s422 + $0x60] sm:$0xff]
          %v1210 = vld [vmem:[%s422 + $0x68] sm:$0xff]
          %v1211 = vld [vmem:[%s422 + $0x70] sm:$0xff]
          %v1212 = vld [vmem:[%s422 + $0x78] sm:$0xff]
          %v1213 = vld [vmem:[%s422 + $0x80] sm:$0xff]
          %v1214 = vld [vmem:[%s422 + $0x88] sm:$0xff]
          %v1215 = vld [vmem:[%s422 + $0x90] sm:$0xff]
          %v1216 = vld [vmem:[%s422 + $0x98] sm:$0xff]
          %v1217 = vld [vmem:[%s422 + $0xa0] sm:$0xff]
          %v1218 = vld [vmem:[%s422 + $0xa8] sm:$0xff]
          %v1219 = vld [vmem:[%s422 + $0xb0] sm:$0xff]
          %v1220 = vld [vmem:[%s422 + $0xb8] sm:$0xff]
          %v1221 = vld [vmem:[%s422 + $0xc0] sm:$0xff]
          %v1222 = vld [vmem:[%s422 + $0xc8] sm:$0xff]
          %v1223 = vld [vmem:[%s422 + $0xd0] sm:$0xff]
          %v1224 = vld [vmem:[%s422 + $0xd8] sm:$0xff]
          %v1225 = vld [vmem:[%s422 + $0xe0] sm:$0xff]
          %v1226 = vld [vmem:[%s422 + $0xe8] sm:$0xff]
          %v1227 = vld [vmem:[%s422 + $0xf0] sm:$0xff]
          %v1228 = vld [vmem:[%s422 + $0xf8] sm:$0xff]
          %1230 = vset.pattern.permute.xlu0 0
          %1231 = vperm.xlu0 %1230, %v1197
          %v1232 = vpop.permute.xlu0 %1231
          %1235 = vset.pattern.permute.xlu0 0
          %1236 = vperm.xlu0 %1235, %v1198
          %v1237 = vpop.permute.xlu0 %1236
          %1240 = vset.pattern.permute.xlu0 0
          %1241 = vperm.xlu0 %1240, %v1199
          %v1242 = vpop.permute.xlu0 %1241
          %1245 = vset.pattern.permute.xlu0 0
          %1246 = vperm.xlu0 %1245, %v1200
          %v1247 = vpop.permute.xlu0 %1246
          %1250 = vset.pattern.permute.xlu0 0
          %1251 = vperm.xlu0 %1250, %v1201
          %v1252 = vpop.permute.xlu0 %1251
          %1255 = vset.pattern.permute.xlu0 0
          %1256 = vperm.xlu0 %1255, %v1202
          %v1257 = vpop.permute.xlu0 %1256
          %1260 = vset.pattern.permute.xlu0 0
          %1261 = vperm.xlu0 %1260, %v1203
          %v1262 = vpop.permute.xlu0 %1261
          %1265 = vset.pattern.permute.xlu0 0
          %1266 = vperm.xlu0 %1265, %v1204
          %v1267 = vpop.permute.xlu0 %1266
          %1270 = vset.pattern.permute.xlu0 0
          %1271 = vperm.xlu0 %1270, %v1205
          %v1272 = vpop.permute.xlu0 %1271
          %1275 = vset.pattern.permute.xlu0 0
          %1276 = vperm.xlu0 %1275, %v1206
          %v1277 = vpop.permute.xlu0 %1276
          %1280 = vset.pattern.permute.xlu0 0
          %1281 = vperm.xlu0 %1280, %v1207
          %v1282 = vpop.permute.xlu0 %1281
          %1285 = vset.pattern.permute.xlu0 0
          %1286 = vperm.xlu0 %1285, %v1208
          %v1287 = vpop.permute.xlu0 %1286
          %1290 = vset.pattern.permute.xlu0 0
          %1291 = vperm.xlu0 %1290, %v1209
          %v1292 = vpop.permute.xlu0 %1291
          %1295 = vset.pattern.permute.xlu0 0
          %1296 = vperm.xlu0 %1295, %v1210
          %v1297 = vpop.permute.xlu0 %1296
          %1300 = vset.pattern.permute.xlu0 0
          %1301 = vperm.xlu0 %1300, %v1211
          %v1302 = vpop.permute.xlu0 %1301
          %1305 = vset.pattern.permute.xlu0 0
          %1306 = vperm.xlu0 %1305, %v1212
          %v1307 = vpop.permute.xlu0 %1306
          %1310 = vset.pattern.permute.xlu0 0
          %1311 = vperm.xlu0 %1310, %v1213
          %v1312 = vpop.permute.xlu0 %1311
          %1315 = vset.pattern.permute.xlu0 0
          %1316 = vperm.xlu0 %1315, %v1214
          %v1317 = vpop.permute.xlu0 %1316
          %1320 = vset.pattern.permute.xlu0 0
          %1321 = vperm.xlu0 %1320, %v1215
          %v1322 = vpop.permute.xlu0 %1321
          %1325 = vset.pattern.permute.xlu0 0
          %1326 = vperm.xlu0 %1325, %v1216
          %v1327 = vpop.permute.xlu0 %1326
          %1330 = vset.pattern.permute.xlu0 0
          %1331 = vperm.xlu0 %1330, %v1217
          %v1332 = vpop.permute.xlu0 %1331
          %1335 = vset.pattern.permute.xlu0 0
          %1336 = vperm.xlu0 %1335, %v1218
          %v1337 = vpop.permute.xlu0 %1336
          %1340 = vset.pattern.permute.xlu0 0
          %1341 = vperm.xlu0 %1340, %v1219
          %v1342 = vpop.permute.xlu0 %1341
          %1345 = vset.pattern.permute.xlu0 0
          %1346 = vperm.xlu0 %1345, %v1220
          %v1347 = vpop.permute.xlu0 %1346
          %1350 = vset.pattern.permute.xlu0 0
          %1351 = vperm.xlu0 %1350, %v1221
          %v1352 = vpop.permute.xlu0 %1351
          %1355 = vset.pattern.permute.xlu0 0
          %1356 = vperm.xlu0 %1355, %v1222
          %v1357 = vpop.permute.xlu0 %1356
          %1360 = vset.pattern.permute.xlu0 0
          %1361 = vperm.xlu0 %1360, %v1223
          %v1362 = vpop.permute.xlu0 %1361
          %1365 = vset.pattern.permute.xlu0 0
          %1366 = vperm.xlu0 %1365, %v1224
          %v1367 = vpop.permute.xlu0 %1366
          %1370 = vset.pattern.permute.xlu0 0
          %1371 = vperm.xlu0 %1370, %v1225
          %v1372 = vpop.permute.xlu0 %1371
          %1375 = vset.pattern.permute.xlu0 0
          %1376 = vperm.xlu0 %1375, %v1226
          %v1377 = vpop.permute.xlu0 %1376
          %1380 = vset.pattern.permute.xlu0 0
          %1381 = vperm.xlu0 %1380, %v1227
          %v1382 = vpop.permute.xlu0 %1381
          %1385 = vset.pattern.permute.xlu0 0
          %1386 = vperm.xlu0 %1385, %v1228
          %v1387 = vpop.permute.xlu0 %1386
          %v1389 = vmul.f32 %v1071, %v1232
          %v1390 = vmul.f32 %v1074, %v1237
          %v1391 = vmul.f32 %v1079, %v1242
          %v1392 = vmul.f32 %v1082, %v1247
          %v1393 = vmul.f32 %v1087, %v1252
          %v1394 = vmul.f32 %v1090, %v1257
          %v1395 = vmul.f32 %v1095, %v1262
          %v1396 = vmul.f32 %v1098, %v1267
          %v1397 = vmul.f32 %v1103, %v1272
          %v1398 = vmul.f32 %v1106, %v1277
          %v1399 = vmul.f32 %v1111, %v1282
          %v1400 = vmul.f32 %v1114, %v1287
          %v1401 = vmul.f32 %v1119, %v1292
          %v1402 = vmul.f32 %v1122, %v1297
          %v1403 = vmul.f32 %v1127, %v1302
          %v1404 = vmul.f32 %v1130, %v1307
          %v1405 = vmul.f32 %v1135, %v1312
          %v1406 = vmul.f32 %v1138, %v1317
          %v1407 = vmul.f32 %v1143, %v1322
          %v1408 = vmul.f32 %v1146, %v1327
          %v1409 = vmul.f32 %v1151, %v1332
          %v1410 = vmul.f32 %v1154, %v1337
          %v1411 = vmul.f32 %v1159, %v1342
          %v1412 = vmul.f32 %v1162, %v1347
          %v1413 = vmul.f32 %v1167, %v1352
          %v1414 = vmul.f32 %v1170, %v1357
          %v1415 = vmul.f32 %v1175, %v1362
          %v1416 = vmul.f32 %v1178, %v1367
          %v1417 = vmul.f32 %v1183, %v1372
          %v1418 = vmul.f32 %v1186, %v1377
          %v1419 = vmul.f32 %v1191, %v1382
          %v1420 = vmul.f32 %v1194, %v1387
          %v1421 = vld [vmem:[%s4] sm:$0x1]
          %v1423 = vlaneseq
          %v1424 = vshrl.u32 %v1423, 7
          %v1425 = vsub.s32 0, %v1424
          %v1426 = vrot.slane %v1421, %v1425
          %v1428 = vadd.f32 %v1389, %v1426
          %v1429 = vadd.f32 %v1390, %v1426
          %v1430 = vadd.f32 %v1391, %v1426
          %v1431 = vadd.f32 %v1392, %v1426
          %v1432 = vadd.f32 %v1393, %v1426
          %v1433 = vadd.f32 %v1394, %v1426
          %v1434 = vadd.f32 %v1395, %v1426
          %v1435 = vadd.f32 %v1396, %v1426
          %v1436 = vadd.f32 %v1397, %v1426
          %v1437 = vadd.f32 %v1398, %v1426
          %v1438 = vadd.f32 %v1399, %v1426
          %v1439 = vadd.f32 %v1400, %v1426
          %v1440 = vadd.f32 %v1401, %v1426
          %v1441 = vadd.f32 %v1402, %v1426
          %v1442 = vadd.f32 %v1403, %v1426
          %v1443 = vadd.f32 %v1404, %v1426
          %v1444 = vadd.f32 %v1405, %v1426
          %v1445 = vadd.f32 %v1406, %v1426
          %v1446 = vadd.f32 %v1407, %v1426
          %v1447 = vadd.f32 %v1408, %v1426
          %v1448 = vadd.f32 %v1409, %v1426
          %v1449 = vadd.f32 %v1410, %v1426
          %v1450 = vadd.f32 %v1411, %v1426
          %v1451 = vadd.f32 %v1412, %v1426
          %v1452 = vadd.f32 %v1413, %v1426
          %v1453 = vadd.f32 %v1414, %v1426
          %v1454 = vadd.f32 %v1415, %v1426
          %v1455 = vadd.f32 %v1416, %v1426
          %v1456 = vadd.f32 %v1417, %v1426
          %v1457 = vadd.f32 %v1418, %v1426
          %v1458 = vadd.f32 %v1419, %v1426
          %v1459 = vadd.f32 %v1420, %v1426
          %vm1460 = vcmp.gt.f32.partialorder %v1428, 0.0
          %vm1461 = vcmp.gt.f32.partialorder %v1429, 0.0
          %vm1462 = vcmp.gt.f32.partialorder %v1430, 0.0
          %vm1463 = vcmp.gt.f32.partialorder %v1431, 0.0
          %vm1464 = vcmp.gt.f32.partialorder %v1432, 0.0
          %vm1465 = vcmp.gt.f32.partialorder %v1433, 0.0
          %vm1466 = vcmp.gt.f32.partialorder %v1434, 0.0
          %vm1467 = vcmp.gt.f32.partialorder %v1435, 0.0
          %vm1468 = vcmp.gt.f32.partialorder %v1436, 0.0
          %vm1469 = vcmp.gt.f32.partialorder %v1437, 0.0
          %vm1470 = vcmp.gt.f32.partialorder %v1438, 0.0
          %vm1471 = vcmp.gt.f32.partialorder %v1439, 0.0
          %vm1472 = vcmp.gt.f32.partialorder %v1440, 0.0
          %vm1473 = vcmp.gt.f32.partialorder %v1441, 0.0
          %vm1474 = vcmp.gt.f32.partialorder %v1442, 0.0
          %vm1475 = vcmp.gt.f32.partialorder %v1443, 0.0
          %vm1476 = vcmp.gt.f32.partialorder %v1444, 0.0
          %vm1477 = vcmp.gt.f32.partialorder %v1445, 0.0
          %vm1478 = vcmp.gt.f32.partialorder %v1446, 0.0
          %vm1479 = vcmp.gt.f32.partialorder %v1447, 0.0
          %vm1480 = vcmp.gt.f32.partialorder %v1448, 0.0
          %vm1481 = vcmp.gt.f32.partialorder %v1449, 0.0
          %vm1482 = vcmp.gt.f32.partialorder %v1450, 0.0
          %vm1483 = vcmp.gt.f32.partialorder %v1451, 0.0
          %vm1484 = vcmp.gt.f32.partialorder %v1452, 0.0
          %vm1485 = vcmp.gt.f32.partialorder %v1453, 0.0
          %vm1486 = vcmp.gt.f32.partialorder %v1454, 0.0
          %vm1487 = vcmp.gt.f32.partialorder %v1455, 0.0
          %vm1488 = vcmp.gt.f32.partialorder %v1456, 0.0
          %vm1489 = vcmp.gt.f32.partialorder %v1457, 0.0
          %vm1490 = vcmp.gt.f32.partialorder %v1458, 0.0
          %vm1491 = vcmp.gt.f32.partialorder %v1459, 0.0
          %v1492 = vmul.f32 %v1428, 0.01
          %v1493 = vmul.f32 %v1429, 0.01
          %v1494 = vmul.f32 %v1430, 0.01
          %v1495 = vmul.f32 %v1431, 0.01
          %v1496 = vmul.f32 %v1432, 0.01
          %v1497 = vmul.f32 %v1433, 0.01
          %v1498 = vmul.f32 %v1434, 0.01
          %v1499 = vmul.f32 %v1435, 0.01
          %v1500 = vmul.f32 %v1436, 0.01
          %v1501 = vmul.f32 %v1437, 0.01
          %v1502 = vmul.f32 %v1438, 0.01
          %v1503 = vmul.f32 %v1439, 0.01
          %v1504 = vmul.f32 %v1440, 0.01
          %v1505 = vmul.f32 %v1441, 0.01
          %v1506 = vmul.f32 %v1442, 0.01
          %v1507 = vmul.f32 %v1443, 0.01
          %v1508 = vmul.f32 %v1444, 0.01
          %v1509 = vmul.f32 %v1445, 0.01
          %v1510 = vmul.f32 %v1446, 0.01
          %v1511 = vmul.f32 %v1447, 0.01
          %v1512 = vmul.f32 %v1448, 0.01
          %v1513 = vmul.f32 %v1449, 0.01
          %v1514 = vmul.f32 %v1450, 0.01
          %v1515 = vmul.f32 %v1451, 0.01
          %v1516 = vmul.f32 %v1452, 0.01
          %v1517 = vmul.f32 %v1453, 0.01
          %v1518 = vmul.f32 %v1454, 0.01
          %v1519 = vmul.f32 %v1455, 0.01
          %v1520 = vmul.f32 %v1456, 0.01
          %v1521 = vmul.f32 %v1457, 0.01
          %v1522 = vmul.f32 %v1458, 0.01
          %v1523 = vmul.f32 %v1459, 0.01
          %v1524 = vsel %vm1460, %v1428, %v1492
          %v1525 = vsel %vm1461, %v1429, %v1493
          %v1526 = vsel %vm1462, %v1430, %v1494
          %v1527 = vsel %vm1463, %v1431, %v1495
          %v1528 = vsel %vm1464, %v1432, %v1496
          %v1529 = vsel %vm1465, %v1433, %v1497
          %v1530 = vsel %vm1466, %v1434, %v1498
          %v1531 = vsel %vm1467, %v1435, %v1499
          %v1532 = vsel %vm1468, %v1436, %v1500
          %v1533 = vsel %vm1469, %v1437, %v1501
          %v1534 = vsel %vm1470, %v1438, %v1502
          %v1535 = vsel %vm1471, %v1439, %v1503
          %v1536 = vsel %vm1472, %v1440, %v1504
          %v1537 = vsel %vm1473, %v1441, %v1505
          %v1538 = vsel %vm1474, %v1442, %v1506
          %v1539 = vsel %vm1475, %v1443, %v1507
          %v1540 = vsel %vm1476, %v1444, %v1508
          %v1541 = vsel %vm1477, %v1445, %v1509
          %v1542 = vsel %vm1478, %v1446, %v1510
          %v1543 = vsel %vm1479, %v1447, %v1511
          %v1544 = vsel %vm1480, %v1448, %v1512
          %v1545 = vsel %vm1481, %v1449, %v1513
          %v1546 = vsel %vm1482, %v1450, %v1514
          %v1547 = vsel %vm1483, %v1451, %v1515
          %v1548 = vsel %vm1484, %v1452, %v1516
          %v1549 = vsel %vm1485, %v1453, %v1517
          %v1550 = vsel %vm1486, %v1454, %v1518
          %v1551 = vsel %vm1487, %v1455, %v1519
          %v1552 = vsel %vm1488, %v1456, %v1520
          %v1553 = vsel %vm1489, %v1457, %v1521
          %v1554 = vsel %vm1490, %v1458, %v1522
          %v1555 = vsel %vm1491, %v1459, %v1523
          %v1556 = vpack.c.bf16 %v1525, %v1524
          %v1557 = vpack.c.bf16 %v1527, %v1526
          %v1558 = vpack.c.bf16 %v1529, %v1528
          %v1559 = vpack.c.bf16 %v1531, %v1530
          %v1560 = vpack.c.bf16 %v1533, %v1532
          %v1561 = vpack.c.bf16 %v1535, %v1534
          %v1562 = vpack.c.bf16 %v1537, %v1536
          %v1563 = vpack.c.bf16 %v1539, %v1538
          %v1564 = vpack.c.bf16 %v1541, %v1540
          %v1565 = vpack.c.bf16 %v1543, %v1542
          %v1566 = vpack.c.bf16 %v1545, %v1544
          %v1567 = vpack.c.bf16 %v1547, %v1546
          %v1568 = vpack.c.bf16 %v1549, %v1548
          %v1569 = vpack.c.bf16 %v1551, %v1550
          %v1570 = vpack.c.bf16 %v1553, %v1552
          %v1571 = vpack.c.bf16 %v1555, %v1554
          %v1572 = vld [vmem:[#allocation9] sm:$0xf]
          %v1573 = vld [vmem:[#allocation9 + $0x4] sm:$0xf]
          %v1574 = vld [vmem:[#allocation9 + $0x8] sm:$0xf]
          %v1575 = vld [vmem:[#allocation9 + $0xc] sm:$0xf]
          %v1576 = vld [vmem:[#allocation9 + $0x10] sm:$0xf]
          %v1577 = vld [vmem:[#allocation9 + $0x14] sm:$0xf]
          %v1578 = vld [vmem:[#allocation9 + $0x18] sm:$0xf]
          %v1579 = vld [vmem:[#allocation9 + $0x1c] sm:$0xf]
          %v1580 = vld [vmem:[#allocation9 + $0x20] sm:$0xf]
          %v1581 = vld [vmem:[#allocation9 + $0x24] sm:$0xf]
          %v1582 = vld [vmem:[#allocation9 + $0x28] sm:$0xf]
          %v1583 = vld [vmem:[#allocation9 + $0x2c] sm:$0xf]
          %v1584 = vld [vmem:[#allocation9 + $0x30] sm:$0xf]
          %v1585 = vld [vmem:[#allocation9 + $0x34] sm:$0xf]
          %v1586 = vld [vmem:[#allocation9 + $0x38] sm:$0xf]
          %v1587 = vld [vmem:[#allocation9 + $0x3c] sm:$0xf]
          %v1604 = vunpack.c.l.b16 %v1572
          %v1605 = vunpack.c.l.b16 %v1573
          %v1606 = vunpack.c.l.b16 %v1574
          %v1607 = vunpack.c.l.b16 %v1575
          %v1608 = vunpack.c.l.b16 %v1576
          %v1609 = vunpack.c.l.b16 %v1577
          %v1610 = vunpack.c.l.b16 %v1578
          %v1611 = vunpack.c.l.b16 %v1579
          %v1612 = vunpack.c.l.b16 %v1580
          %v1613 = vunpack.c.l.b16 %v1581
          %v1614 = vunpack.c.l.b16 %v1582
          %v1615 = vunpack.c.l.b16 %v1583
          %v1616 = vunpack.c.l.b16 %v1584
          %v1617 = vunpack.c.l.b16 %v1585
          %v1618 = vunpack.c.l.b16 %v1586
          %v1619 = vunpack.c.l.b16 %v1587
          %v1620 = vpack.c.b16 %v1605, %v1604
          %v1621 = vpack.c.b16 %v1607, %v1606
          %v1622 = vpack.c.b16 %v1609, %v1608
          %v1623 = vpack.c.b16 %v1611, %v1610
          %v1624 = vpack.c.b16 %v1613, %v1612
          %v1625 = vpack.c.b16 %v1615, %v1614
          %v1626 = vpack.c.b16 %v1617, %v1616
          %v1627 = vpack.c.b16 %v1619, %v1618
          %1636 = vmatprep.subr.bf16.mxu0 0
          %1637 = vmatpush1.bf16.msra.mxu0 %v1620
          %1638 = vmatprep.subr.bf16.mxu0 0
          %1639 = vmatpush1.bf16.msra.mxu0 %v1621
          %1640 = vmatprep.subr.bf16.mxu0 0
          %1641 = vmatpush1.bf16.msra.mxu0 %v1622
          %1642 = vmatprep.subr.bf16.mxu0 0
          %1643 = vmatpush1.bf16.msra.mxu0 %v1623
          %1644 = vmatprep.subr.bf16.mxu0 0
          %1645 = vmatpush1.bf16.msra.mxu0 %v1624
          %1646 = vmatprep.subr.bf16.mxu0 0
          %1647 = vmatpush1.bf16.msra.mxu0 %v1625
          %1648 = vmatprep.subr.bf16.mxu0 0
          %1649 = vmatpush1.bf16.msra.mxu0 %v1626
          %1650 = vmatprep.subr.bf16.mxu0 0
          %1651 = vmatpush1.bf16.msra.mxu0 %v1627
          %1652 = vmatprep.subr.bf16.mxu0 0
          %1653 = vmatpush1.bf16.msra.mxu0 0
          %1654 = vmatprep.subr.bf16.mxu0 0
          %1655 = vmatpush1.bf16.msra.mxu0 0
          %1656 = vmatprep.subr.bf16.mxu0 0
          %1657 = vmatpush1.bf16.msra.mxu0 0
          %1658 = vmatprep.subr.bf16.mxu0 0
          %1659 = vmatpush1.bf16.msra.mxu0 0
          %1660 = vmatprep.subr.bf16.mxu0 0
          %1661 = vmatpush1.bf16.msra.mxu0 0
          %1662 = vmatprep.subr.bf16.mxu0 0
          %1663 = vmatpush1.bf16.msra.mxu0 0
          %1664 = vmatprep.subr.bf16.mxu0 0
          %1665 = vmatpush1.bf16.msra.mxu0 0
          %1666 = vmatprep.subr.bf16.mxu0 0
          %1667 = vmatpush1.bf16.msra.mxu0 0
          %1668 = vmatprep.mubr.bf16.mxu0 0
          %1669 = vmatmul.mubr.bf16.gmra.mrb[0].mxu0 %v1556
          %v1670 = vpop.f32.mrb[0].mxu0
          %v1671 = vadd.f32 0.0, %v1670
          %v1672 = vpop.f32.mrb[0].mxu0
          %v1673 = vpop.f32.mrb[0].mxu0
          %v1674 = vadd.f32 0.0, %v1673
          %v1675 = vpop.f32.mrb[0].mxu0
          %1676 = vmatprep.mubr.bf16.mxu0 0
          %1677 = vmatmul.mubr.bf16.gmra.mrb[0].mxu0 %v1557
          %v1678 = vpop.f32.mrb[0].mxu0
          %v1679 = vadd.f32 0.0, %v1678
          %v1680 = vpop.f32.mrb[0].mxu0
          %v1681 = vpop.f32.mrb[0].mxu0
          %v1682 = vadd.f32 0.0, %v1681
          %v1683 = vpop.f32.mrb[0].mxu0
          %1684 = vmatprep.mubr.bf16.mxu0 0
          %1685 = vmatmul.mubr.bf16.gmra.mrb[0].mxu0 %v1558
          %v1686 = vpop.f32.mrb[0].mxu0
          %v1687 = vadd.f32 0.0, %v1686
          %v1688 = vpop.f32.mrb[0].mxu0
          %v1689 = vpop.f32.mrb[0].mxu0
          %v1690 = vadd.f32 0.0, %v1689
          %v1691 = vpop.f32.mrb[0].mxu0
          %1692 = vmatprep.mubr.bf16.mxu0 0
          %1693 = vmatmul.mubr.bf16.gmra.mrb[0].mxu0 %v1559
          %v1694 = vpop.f32.mrb[0].mxu0
          %v1695 = vadd.f32 0.0, %v1694
          %v1696 = vpop.f32.mrb[0].mxu0
          %v1697 = vpop.f32.mrb[0].mxu0
          %v1698 = vadd.f32 0.0, %v1697
          %v1699 = vpop.f32.mrb[0].mxu0
          %1700 = vmatprep.mubr.bf16.mxu0 0
          %1701 = vmatmul.mubr.bf16.gmra.mrb[0].mxu0 %v1560
          %v1702 = vpop.f32.mrb[0].mxu0
          %v1703 = vadd.f32 0.0, %v1702
          %v1704 = vpop.f32.mrb[0].mxu0
          %v1705 = vpop.f32.mrb[0].mxu0
          %v1706 = vadd.f32 0.0, %v1705
          %v1707 = vpop.f32.mrb[0].mxu0
          %1708 = vmatprep.mubr.bf16.mxu0 0
          %1709 = vmatmul.mubr.bf16.gmra.mrb[0].mxu0 %v1561
          %v1710 = vpop.f32.mrb[0].mxu0
          %v1711 = vadd.f32 0.0, %v1710
          %v1712 = vpop.f32.mrb[0].mxu0
          %v1713 = vpop.f32.mrb[0].mxu0
          %v1714 = vadd.f32 0.0, %v1713
          %v1715 = vpop.f32.mrb[0].mxu0
          %1716 = vmatprep.mubr.bf16.mxu0 0
          %1717 = vmatmul.mubr.bf16.gmra.mrb[0].mxu0 %v1562
          %v1718 = vpop.f32.mrb[0].mxu0
          %v1719 = vadd.f32 0.0, %v1718
          %v1720 = vpop.f32.mrb[0].mxu0
          %v1721 = vpop.f32.mrb[0].mxu0
          %v1722 = vadd.f32 0.0, %v1721
          %v1723 = vpop.f32.mrb[0].mxu0
          %1724 = vmatprep.mubr.bf16.mxu0 0
          %1725 = vmatmul.mubr.bf16.gmra.mrb[0].mxu0 %v1563
          %v1726 = vpop.f32.mrb[0].mxu0
          %v1727 = vadd.f32 0.0, %v1726
          %v1728 = vpop.f32.mrb[0].mxu0
          %v1729 = vpop.f32.mrb[0].mxu0
          %v1730 = vadd.f32 0.0, %v1729
          %v1731 = vpop.f32.mrb[0].mxu0
          %1732 = vmatprep.mubr.bf16.mxu0 0
          %1733 = vmatmul.mubr.bf16.gmra.mrb[0].mxu0 %v1564
          %v1734 = vpop.f32.mrb[0].mxu0
          %v1735 = vadd.f32 0.0, %v1734
          %v1736 = vpop.f32.mrb[0].mxu0
          %v1737 = vpop.f32.mrb[0].mxu0
          %v1738 = vadd.f32 0.0, %v1737
          %v1739 = vpop.f32.mrb[0].mxu0
          %1740 = vmatprep.mubr.bf16.mxu0 0
          %1741 = vmatmul.mubr.bf16.gmra.mrb[0].mxu0 %v1565
          %v1742 = vpop.f32.mrb[0].mxu0
          %v1743 = vadd.f32 0.0, %v1742
          %v1744 = vpop.f32.mrb[0].mxu0
          %v1745 = vpop.f32.mrb[0].mxu0
          %v1746 = vadd.f32 0.0, %v1745
          %v1747 = vpop.f32.mrb[0].mxu0
          %1748 = vmatprep.mubr.bf16.mxu0 0
          %1749 = vmatmul.mubr.bf16.gmra.mrb[0].mxu0 %v1566
          %v1750 = vpop.f32.mrb[0].mxu0
          %v1751 = vadd.f32 0.0, %v1750
          %v1752 = vpop.f32.mrb[0].mxu0
          %v1753 = vpop.f32.mrb[0].mxu0
          %v1754 = vadd.f32 0.0, %v1753
          %v1755 = vpop.f32.mrb[0].mxu0
          %1756 = vmatprep.mubr.bf16.mxu0 0
          %1757 = vmatmul.mubr.bf16.gmra.mrb[0].mxu0 %v1567
          %v1758 = vpop.f32.mrb[0].mxu0
          %v1759 = vadd.f32 0.0, %v1758
          %v1760 = vpop.f32.mrb[0].mxu0
          %v1761 = vpop.f32.mrb[0].mxu0
          %v1762 = vadd.f32 0.0, %v1761
          %v1763 = vpop.f32.mrb[0].mxu0
          %1764 = vmatprep.mubr.bf16.mxu0 0
          %1765 = vmatmul.mubr.bf16.gmra.mrb[0].mxu0 %v1568
          %v1766 = vpop.f32.mrb[0].mxu0
          %v1767 = vadd.f32 0.0, %v1766
          %v1768 = vpop.f32.mrb[0].mxu0
          %v1769 = vpop.f32.mrb[0].mxu0
          %v1770 = vadd.f32 0.0, %v1769
          %v1771 = vpop.f32.mrb[0].mxu0
          %1772 = vmatprep.mubr.bf16.mxu0 0
          %1773 = vmatmul.mubr.bf16.gmra.mrb[0].mxu0 %v1569
          %v1774 = vpop.f32.mrb[0].mxu0
          %v1775 = vadd.f32 0.0, %v1774
          %v1776 = vpop.f32.mrb[0].mxu0
          %v1777 = vpop.f32.mrb[0].mxu0
          %v1778 = vadd.f32 0.0, %v1777
          %v1779 = vpop.f32.mrb[0].mxu0
          %1780 = vmatprep.mubr.bf16.mxu0 0
          %1781 = vmatmul.mubr.bf16.gmra.mrb[0].mxu0 %v1570
          %v1782 = vpop.f32.mrb[0].mxu0
          %v1783 = vadd.f32 0.0, %v1782
          %v1784 = vpop.f32.mrb[0].mxu0
          %v1785 = vpop.f32.mrb[0].mxu0
          %v1786 = vadd.f32 0.0, %v1785
          %v1787 = vpop.f32.mrb[0].mxu0
          %1788 = vmatprep.mubr.bf16.mxu0 0
          %1789 = vmatmul.mubr.bf16.gmra.mrb[0].mxu0 %v1571
          %v1790 = vpop.f32.mrb[0].mxu0
          %v1791 = vadd.f32 0.0, %v1790
          %v1792 = vpop.f32.mrb[0].mxu0
          %v1793 = vpop.f32.mrb[0].mxu0
          %v1794 = vadd.f32 0.0, %v1793
          %v1795 = vpop.f32.mrb[0].mxu0
          %1796 = vdwg.mxu0
          %v1797 = vpack.c.bf16 %v1674, %v1671
          %v1798 = vpack.c.bf16 %v1682, %v1679
          %v1799 = vpack.c.bf16 %v1690, %v1687
          %v1800 = vpack.c.bf16 %v1698, %v1695
          %v1801 = vpack.c.bf16 %v1706, %v1703
          %v1802 = vpack.c.bf16 %v1714, %v1711
          %v1803 = vpack.c.bf16 %v1722, %v1719
          %v1804 = vpack.c.bf16 %v1730, %v1727
          %v1805 = vpack.c.bf16 %v1738, %v1735
          %v1806 = vpack.c.bf16 %v1746, %v1743
          %v1807 = vpack.c.bf16 %v1754, %v1751
          %v1808 = vpack.c.bf16 %v1762, %v1759
          %v1809 = vpack.c.bf16 %v1770, %v1767
          %v1810 = vpack.c.bf16 %v1778, %v1775
          %v1811 = vpack.c.bf16 %v1786, %v1783
          %v1812 = vpack.c.bf16 %v1794, %v1791
          %s1813 = sshra.s32 %s430, 4
          %s1814 = sand.u32 %s430, 15
          %s1815 = smul.addr %s1813, 8
          %s1816 = scalar_lea.vmem [#allocation3], %s1815
          %1817 = vst [vmem:[%s1816] sm:$0xff] %v1797
          %1818 = vst [vmem:[%s1816 + $0x8] sm:$0xff] %v1798
          %1819 = vst [vmem:[%s1816 + $0x10] sm:$0xff] %v1799
          %1820 = vst [vmem:[%s1816 + $0x18] sm:$0xff] %v1800
          %1821 = vst [vmem:[%s1816 + $0x20] sm:$0xff] %v1801
          %1822 = vst [vmem:[%s1816 + $0x28] sm:$0xff] %v1802
          %1823 = vst [vmem:[%s1816 + $0x30] sm:$0xff] %v1803
          %1824 = vst [vmem:[%s1816 + $0x38] sm:$0xff] %v1804
          %1825 = vst [vmem:[%s1816 + $0x40] sm:$0xff] %v1805
          %1826 = vst [vmem:[%s1816 + $0x48] sm:$0xff] %v1806
          %1827 = vst [vmem:[%s1816 + $0x50] sm:$0xff] %v1807
          %1828 = vst [vmem:[%s1816 + $0x58] sm:$0xff] %v1808
          %1829 = vst [vmem:[%s1816 + $0x60] sm:$0xff] %v1809
          %1830 = vst [vmem:[%s1816 + $0x68] sm:$0xff] %v1810
          %1831 = vst [vmem:[%s1816 + $0x70] sm:$0xff] %v1811
          %1832 = vst [vmem:[%s1816 + $0x78] sm:$0xff] %v1812
        $region68: #{tpu_custom_call.1} parent=47 // pred_fallthru
          _
        %p1833 = scmp.eq.s32.totalorder %s29, 2
        // Predicated region
        $region69: #{tpu_custom_call.1} parent=47 // pred_check
          %p1834 = pneg %p1833
        $region70: #{tpu_custom_call.1} parent=47 // pred_check_branch
          %1836 = sbr.rel (%p1834) target = $region72
        $region71: #{tpu_custom_call.1} parent=47 // pred_region
          %v1837 = vld [vmem:[%s412] sm:$0xff]
          %v1838 = vld [vmem:[%s412 + $0x8] sm:$0xff]
          %v1839 = vld [vmem:[%s412 + $0x10] sm:$0xff]
          %v1840 = vld [vmem:[%s412 + $0x18] sm:$0xff]
          %v1841 = vld [vmem:[%s412 + $0x20] sm:$0xff]
          %v1842 = vld [vmem:[%s412 + $0x28] sm:$0xff]
          %v1843 = vld [vmem:[%s412 + $0x30] sm:$0xff]
          %v1844 = vld [vmem:[%s412 + $0x38] sm:$0xff]
          %v1845 = vld [vmem:[%s412 + $0x40] sm:$0xff]
          %v1846 = vld [vmem:[%s412 + $0x48] sm:$0xff]
          %v1847 = vld [vmem:[%s412 + $0x50] sm:$0xff]
          %v1848 = vld [vmem:[%s412 + $0x58] sm:$0xff]
          %v1849 = vld [vmem:[%s412 + $0x60] sm:$0xff]
          %v1850 = vld [vmem:[%s412 + $0x68] sm:$0xff]
          %v1851 = vld [vmem:[%s412 + $0x70] sm:$0xff]
          %v1852 = vld [vmem:[%s412 + $0x78] sm:$0xff]
          %v1853 = vld [vmem:[%s412 + $0x80] sm:$0xff]
          %v1854 = vld [vmem:[%s412 + $0x88] sm:$0xff]
          %v1855 = vld [vmem:[%s412 + $0x90] sm:$0xff]
          %v1856 = vld [vmem:[%s412 + $0x98] sm:$0xff]
          %v1857 = vld [vmem:[%s412 + $0xa0] sm:$0xff]
          %v1858 = vld [vmem:[%s412 + $0xa8] sm:$0xff]
          %v1859 = vld [vmem:[%s412 + $0xb0] sm:$0xff]
          %v1860 = vld [vmem:[%s412 + $0xb8] sm:$0xff]
          %v1861 = vld [vmem:[%s412 + $0xc0] sm:$0xff]
          %v1862 = vld [vmem:[%s412 + $0xc8] sm:$0xff]
          %v1863 = vld [vmem:[%s412 + $0xd0] sm:$0xff]
          %v1864 = vld [vmem:[%s412 + $0xd8] sm:$0xff]
          %v1865 = vld [vmem:[%s412 + $0xe0] sm:$0xff]
          %v1866 = vld [vmem:[%s412 + $0xe8] sm:$0xff]
          %v1867 = vld [vmem:[%s412 + $0xf0] sm:$0xff]
          %v1868 = vld [vmem:[%s412 + $0xf8] sm:$0xff]
          %v1869 = vld [vmem:[#allocation3] sm:$0xff]
          %v1870 = vld [vmem:[#allocation3 + $0x8] sm:$0xff]
          %v1871 = vld [vmem:[#allocation3 + $0x10] sm:$0xff]
          %v1872 = vld [vmem:[#allocation3 + $0x18] sm:$0xff]
          %v1873 = vld [vmem:[#allocation3 + $0x20] sm:$0xff]
          %v1874 = vld [vmem:[#allocation3 + $0x28] sm:$0xff]
          %v1875 = vld [vmem:[#allocation3 + $0x30] sm:$0xff]
          %v1876 = vld [vmem:[#allocation3 + $0x38] sm:$0xff]
          %v1877 = vld [vmem:[#allocation3 + $0x40] sm:$0xff]
          %v1878 = vld [vmem:[#allocation3 + $0x48] sm:$0xff]
          %v1879 = vld [vmem:[#allocation3 + $0x50] sm:$0xff]
          %v1880 = vld [vmem:[#allocation3 + $0x58] sm:$0xff]
          %v1881 = vld [vmem:[#allocation3 + $0x60] sm:$0xff]
          %v1882 = vld [vmem:[#allocation3 + $0x68] sm:$0xff]
          %v1883 = vld [vmem:[#allocation3 + $0x70] sm:$0xff]
          %v1884 = vld [vmem:[#allocation3 + $0x78] sm:$0xff]
          %v1917 = vunpack.c.l.b16 %v1837
          %v1918 = vunpack.c.h.b16 %v1837
          %v1919 = vunpack.c.l.b16 %v1838
          %v1920 = vunpack.c.h.b16 %v1838
          %v1921 = vunpack.c.l.b16 %v1839
          %v1922 = vunpack.c.h.b16 %v1839
          %v1923 = vunpack.c.l.b16 %v1840
          %v1924 = vunpack.c.h.b16 %v1840
          %v1925 = vunpack.c.l.b16 %v1841
          %v1926 = vunpack.c.h.b16 %v1841
          %v1927 = vunpack.c.l.b16 %v1842
          %v1928 = vunpack.c.h.b16 %v1842
          %v1929 = vunpack.c.l.b16 %v1843
          %v1930 = vunpack.c.h.b16 %v1843
          %v1931 = vunpack.c.l.b16 %v1844
          %v1932 = vunpack.c.h.b16 %v1844
          %v1933 = vunpack.c.l.b16 %v1845
          %v1934 = vunpack.c.h.b16 %v1845
          %v1935 = vunpack.c.l.b16 %v1846
          %v1936 = vunpack.c.h.b16 %v1846
          %v1937 = vunpack.c.l.b16 %v1847
          %v1938 = vunpack.c.h.b16 %v1847
          %v1939 = vunpack.c.l.b16 %v1848
          %v1940 = vunpack.c.h.b16 %v1848
          %v1941 = vunpack.c.l.b16 %v1849
          %v1942 = vunpack.c.h.b16 %v1849
          %v1943 = vunpack.c.l.b16 %v1850
          %v1944 = vunpack.c.h.b16 %v1850
          %v1945 = vunpack.c.l.b16 %v1851
          %v1946 = vunpack.c.h.b16 %v1851
          %v1947 = vunpack.c.l.b16 %v1852
          %v1948 = vunpack.c.h.b16 %v1852
          %v1949 = vunpack.c.l.b16 %v1853
          %v1950 = vunpack.c.h.b16 %v1853
          %v1951 = vunpack.c.l.b16 %v1854
          %v1952 = vunpack.c.h.b16 %v1854
          %v1953 = vunpack.c.l.b16 %v1855
          %v1954 = vunpack.c.h.b16 %v1855
          %v1955 = vunpack.c.l.b16 %v1856
          %v1956 = vunpack.c.h.b16 %v1856
          %v1957 = vunpack.c.l.b16 %v1857
          %v1958 = vunpack.c.h.b16 %v1857
          %v1959 = vunpack.c.l.b16 %v1858
          %v1960 = vunpack.c.h.b16 %v1858
          %v1961 = vunpack.c.l.b16 %v1859
          %v1962 = vunpack.c.h.b16 %v1859
          %v1963 = vunpack.c.l.b16 %v1860
          %v1964 = vunpack.c.h.b16 %v1860
          %v1965 = vunpack.c.l.b16 %v1861
          %v1966 = vunpack.c.h.b16 %v1861
          %v1967 = vunpack.c.l.b16 %v1862
          %v1968 = vunpack.c.h.b16 %v1862
          %v1969 = vunpack.c.l.b16 %v1863
          %v1970 = vunpack.c.h.b16 %v1863
          %v1971 = vunpack.c.l.b16 %v1864
          %v1972 = vunpack.c.h.b16 %v1864
          %v1973 = vunpack.c.l.b16 %v1865
          %v1974 = vunpack.c.h.b16 %v1865
          %v1975 = vunpack.c.l.b16 %v1866
          %v1976 = vunpack.c.h.b16 %v1866
          %v1977 = vunpack.c.l.b16 %v1867
          %v1978 = vunpack.c.h.b16 %v1867
          %v1979 = vunpack.c.l.b16 %v1868
          %v1980 = vunpack.c.h.b16 %v1868
          %v1981 = vpack.c.b16 %v1919, %v1917
          %v1982 = vpack.c.b16 %v1920, %v1918
          %v1983 = vpack.c.b16 %v1923, %v1921
          %v1984 = vpack.c.b16 %v1924, %v1922
          %v1985 = vpack.c.b16 %v1927, %v1925
          %v1986 = vpack.c.b16 %v1928, %v1926
          %v1987 = vpack.c.b16 %v1931, %v1929
          %v1988 = vpack.c.b16 %v1932, %v1930
          %v1989 = vpack.c.b16 %v1935, %v1933
          %v1990 = vpack.c.b16 %v1936, %v1934
          %v1991 = vpack.c.b16 %v1939, %v1937
          %v1992 = vpack.c.b16 %v1940, %v1938
          %v1993 = vpack.c.b16 %v1943, %v1941
          %v1994 = vpack.c.b16 %v1944, %v1942
          %v1995 = vpack.c.b16 %v1947, %v1945
          %v1996 = vpack.c.b16 %v1948, %v1946
          %v1997 = vpack.c.b16 %v1951, %v1949
          %v1998 = vpack.c.b16 %v1952, %v1950
          %v1999 = vpack.c.b16 %v1955, %v1953
          %v2000 = vpack.c.b16 %v1956, %v1954
          %v2001 = vpack.c.b16 %v1959, %v1957
          %v2002 = vpack.c.b16 %v1960, %v1958
          %v2003 = vpack.c.b16 %v1963, %v1961
          %v2004 = vpack.c.b16 %v1964, %v1962
          %v2005 = vpack.c.b16 %v1967, %v1965
          %v2006 = vpack.c.b16 %v1968, %v1966
          %v2007 = vpack.c.b16 %v1971, %v1969
          %v2008 = vpack.c.b16 %v1972, %v1970
          %v2009 = vpack.c.b16 %v1975, %v1973
          %v2010 = vpack.c.b16 %v1976, %v1974
          %v2011 = vpack.c.b16 %v1979, %v1977
          %v2012 = vpack.c.b16 %v1980, %v1978
          %2045 = vmatprep.subr.bf16.mxu0 0
          %2046 = vmatpush1.bf16.msra.mxu0 %v1869
          %2047 = vmatprep.subr.bf16.mxu0 0
          %2048 = vmatpush1.bf16.msra.mxu0 %v1870
          %2049 = vmatprep.subr.bf16.mxu0 0
          %2050 = vmatpush1.bf16.msra.mxu0 %v1871
          %2051 = vmatprep.subr.bf16.mxu0 0
          %2052 = vmatpush1.bf16.msra.mxu0 %v1872
          %2053 = vmatprep.subr.bf16.mxu0 0
          %2054 = vmatpush1.bf16.msra.mxu0 %v1873
          %2055 = vmatprep.subr.bf16.mxu0 0
          %2056 = vmatpush1.bf16.msra.mxu0 %v1874
          %2057 = vmatprep.subr.bf16.mxu0 0
          %2058 = vmatpush1.bf16.msra.mxu0 %v1875
          %2059 = vmatprep.subr.bf16.mxu0 0
          %2060 = vmatpush1.bf16.msra.mxu0 %v1876
          %2061 = vmatprep.subr.bf16.mxu0 0
          %2062 = vmatpush1.bf16.msra.mxu0 %v1877
          %2063 = vmatprep.subr.bf16.mxu0 0
          %2064 = vmatpush1.bf16.msra.mxu0 %v1878
          %2065 = vmatprep.subr.bf16.mxu0 0
          %2066 = vmatpush1.bf16.msra.mxu0 %v1879
          %2067 = vmatprep.subr.bf16.mxu0 0
          %2068 = vmatpush1.bf16.msra.mxu0 %v1880
          %2069 = vmatprep.subr.bf16.mxu0 0
          %2070 = vmatpush1.bf16.msra.mxu0 %v1881
          %2071 = vmatprep.subr.bf16.mxu0 0
          %2072 = vmatpush1.bf16.msra.mxu0 %v1882
          %2073 = vmatprep.subr.bf16.mxu0 0
          %2074 = vmatpush1.bf16.msra.mxu0 %v1883
          %2075 = vmatprep.subr.bf16.mxu0 0
          %2076 = vmatpush1.bf16.msra.mxu0 %v1884
          %2077 = vmatprep.mubr.bf16.mxu0 %v1982
          %2078 = vmatmul.mubr.bf16.gmra.mrb[0].mxu0 %v1981
          %v2079 = vpop.f32.mrb[0].mxu0
          %v2080 = vadd.f32 0.0, %v2079
          %v2081 = vpop.f32.mrb[0].mxu0
          %v2082 = vpop.f32.mrb[0].mxu0
          %v2083 = vadd.f32 0.0, %v2082
          %v2084 = vpop.f32.mrb[0].mxu0
          %2085 = vmatprep.mubr.bf16.mxu0 %v1984
          %2086 = vmatmul.mubr.bf16.gmra.mrb[0].mxu0 %v1983
          %v2087 = vpop.f32.mrb[0].mxu0
          %v2088 = vadd.f32 0.0, %v2087
          %v2089 = vpop.f32.mrb[0].mxu0
          %v2090 = vpop.f32.mrb[0].mxu0
          %v2091 = vadd.f32 0.0, %v2090
          %v2092 = vpop.f32.mrb[0].mxu0
          %2093 = vmatprep.mubr.bf16.mxu0 %v1986
          %2094 = vmatmul.mubr.bf16.gmra.mrb[0].mxu0 %v1985
          %v2095 = vpop.f32.mrb[0].mxu0
          %v2096 = vadd.f32 0.0, %v2095
          %v2097 = vpop.f32.mrb[0].mxu0
          %v2098 = vpop.f32.mrb[0].mxu0
          %v2099 = vadd.f32 0.0, %v2098
          %v2100 = vpop.f32.mrb[0].mxu0
          %2101 = vmatprep.mubr.bf16.mxu0 %v1988
          %2102 = vmatmul.mubr.bf16.gmra.mrb[0].mxu0 %v1987
          %v2103 = vpop.f32.mrb[0].mxu0
          %v2104 = vadd.f32 0.0, %v2103
          %v2105 = vpop.f32.mrb[0].mxu0
          %v2106 = vpop.f32.mrb[0].mxu0
          %v2107 = vadd.f32 0.0, %v2106
          %v2108 = vpop.f32.mrb[0].mxu0
          %2109 = vmatprep.mubr.bf16.mxu0 %v1990
          %2110 = vmatmul.mubr.bf16.gmra.mrb[0].mxu0 %v1989
          %v2111 = vpop.f32.mrb[0].mxu0
          %v2112 = vadd.f32 0.0, %v2111
          %v2113 = vpop.f32.mrb[0].mxu0
          %v2114 = vpop.f32.mrb[0].mxu0
          %v2115 = vadd.f32 0.0, %v2114
          %v2116 = vpop.f32.mrb[0].mxu0
          %2117 = vmatprep.mubr.bf16.mxu0 %v1992
          %2118 = vmatmul.mubr.bf16.gmra.mrb[0].mxu0 %v1991
          %v2119 = vpop.f32.mrb[0].mxu0
          %v2120 = vadd.f32 0.0, %v2119
          %v2121 = vpop.f32.mrb[0].mxu0
          %v2122 = vpop.f32.mrb[0].mxu0
          %v2123 = vadd.f32 0.0, %v2122
          %v2124 = vpop.f32.mrb[0].mxu0
          %2125 = vmatprep.mubr.bf16.mxu0 %v1994
          %2126 = vmatmul.mubr.bf16.gmra.mrb[0].mxu0 %v1993
          %v2127 = vpop.f32.mrb[0].mxu0
          %v2128 = vadd.f32 0.0, %v2127
          %v2129 = vpop.f32.mrb[0].mxu0
          %v2130 = vpop.f32.mrb[0].mxu0
          %v2131 = vadd.f32 0.0, %v2130
          %v2132 = vpop.f32.mrb[0].mxu0
          %2133 = vmatprep.mubr.bf16.mxu0 %v1996
          %2134 = vmatmul.mubr.bf16.gmra.mrb[0].mxu0 %v1995
          %v2135 = vpop.f32.mrb[0].mxu0
          %v2136 = vadd.f32 0.0, %v2135
          %v2137 = vpop.f32.mrb[0].mxu0
          %v2138 = vpop.f32.mrb[0].mxu0
          %v2139 = vadd.f32 0.0, %v2138
          %v2140 = vpop.f32.mrb[0].mxu0
          %2141 = vmatprep.mubr.bf16.mxu0 %v1998
          %2142 = vmatmul.mubr.bf16.gmra.mrb[0].mxu0 %v1997
          %v2143 = vpop.f32.mrb[0].mxu0
          %v2144 = vadd.f32 0.0, %v2143
          %v2145 = vpop.f32.mrb[0].mxu0
          %v2146 = vpop.f32.mrb[0].mxu0
          %v2147 = vadd.f32 0.0, %v2146
          %v2148 = vpop.f32.mrb[0].mxu0
          %2149 = vmatprep.mubr.bf16.mxu0 %v2000
          %2150 = vmatmul.mubr.bf16.gmra.mrb[0].mxu0 %v1999
          %v2151 = vpop.f32.mrb[0].mxu0
          %v2152 = vadd.f32 0.0, %v2151
          %v2153 = vpop.f32.mrb[0].mxu0
          %v2154 = vpop.f32.mrb[0].mxu0
          %v2155 = vadd.f32 0.0, %v2154
          %v2156 = vpop.f32.mrb[0].mxu0
          %2157 = vmatprep.mubr.bf16.mxu0 %v2002
          %2158 = vmatmul.mubr.bf16.gmra.mrb[0].mxu0 %v2001
          %v2159 = vpop.f32.mrb[0].mxu0
          %v2160 = vadd.f32 0.0, %v2159
          %v2161 = vpop.f32.mrb[0].mxu0
          %v2162 = vpop.f32.mrb[0].mxu0
          %v2163 = vadd.f32 0.0, %v2162
          %v2164 = vpop.f32.mrb[0].mxu0
          %2165 = vmatprep.mubr.bf16.mxu0 %v2004
          %2166 = vmatmul.mubr.bf16.gmra.mrb[0].mxu0 %v2003
          %v2167 = vpop.f32.mrb[0].mxu0
          %v2168 = vadd.f32 0.0, %v2167
          %v2169 = vpop.f32.mrb[0].mxu0
          %v2170 = vpop.f32.mrb[0].mxu0
          %v2171 = vadd.f32 0.0, %v2170
          %v2172 = vpop.f32.mrb[0].mxu0
          %2173 = vmatprep.mubr.bf16.mxu0 %v2006
          %2174 = vmatmul.mubr.bf16.gmra.mrb[0].mxu0 %v2005
          %v2175 = vpop.f32.mrb[0].mxu0
          %v2176 = vadd.f32 0.0, %v2175
          %v2177 = vpop.f32.mrb[0].mxu0
          %v2178 = vpop.f32.mrb[0].mxu0
          %v2179 = vadd.f32 0.0, %v2178
          %v2180 = vpop.f32.mrb[0].mxu0
          %2181 = vmatprep.mubr.bf16.mxu0 %v2008
          %2182 = vmatmul.mubr.bf16.gmra.mrb[0].mxu0 %v2007
          %v2183 = vpop.f32.mrb[0].mxu0
          %v2184 = vadd.f32 0.0, %v2183
          %v2185 = vpop.f32.mrb[0].mxu0
          %v2186 = vpop.f32.mrb[0].mxu0
          %v2187 = vadd.f32 0.0, %v2186
          %v2188 = vpop.f32.mrb[0].mxu0
          %2189 = vmatprep.mubr.bf16.mxu0 %v2010
          %2190 = vmatmul.mubr.bf16.gmra.mrb[0].mxu0 %v2009
          %v2191 = vpop.f32.mrb[0].mxu0
          %v2192 = vadd.f32 0.0, %v2191
          %v2193 = vpop.f32.mrb[0].mxu0
          %v2194 = vpop.f32.mrb[0].mxu0
          %v2195 = vadd.f32 0.0, %v2194
          %v2196 = vpop.f32.mrb[0].mxu0
          %2197 = vmatprep.mubr.bf16.mxu0 %v2012
          %2198 = vmatmul.mubr.bf16.gmra.mrb[0].mxu0 %v2011
          %v2199 = vpop.f32.mrb[0].mxu0
          %v2200 = vadd.f32 0.0, %v2199
          %v2201 = vpop.f32.mrb[0].mxu0
          %v2202 = vpop.f32.mrb[0].mxu0
          %v2203 = vadd.f32 0.0, %v2202
          %v2204 = vpop.f32.mrb[0].mxu0
          %2205 = vdwg.mxu0
          %v2206 = vld [vmem:[%s422] sm:$0xff]
          %v2207 = vld [vmem:[%s422 + $0x8] sm:$0xff]
          %v2208 = vld [vmem:[%s422 + $0x10] sm:$0xff]
          %v2209 = vld [vmem:[%s422 + $0x18] sm:$0xff]
          %v2210 = vld [vmem:[%s422 + $0x20] sm:$0xff]
          %v2211 = vld [vmem:[%s422 + $0x28] sm:$0xff]
          %v2212 = vld [vmem:[%s422 + $0x30] sm:$0xff]
          %v2213 = vld [vmem:[%s422 + $0x38] sm:$0xff]
          %v2214 = vld [vmem:[%s422 + $0x40] sm:$0xff]
          %v2215 = vld [vmem:[%s422 + $0x48] sm:$0xff]
          %v2216 = vld [vmem:[%s422 + $0x50] sm:$0xff]
          %v2217 = vld [vmem:[%s422 + $0x58] sm:$0xff]
          %v2218 = vld [vmem:[%s422 + $0x60] sm:$0xff]
          %v2219 = vld [vmem:[%s422 + $0x68] sm:$0xff]
          %v2220 = vld [vmem:[%s422 + $0x70] sm:$0xff]
          %v2221 = vld [vmem:[%s422 + $0x78] sm:$0xff]
          %v2222 = vld [vmem:[%s422 + $0x80] sm:$0xff]
          %v2223 = vld [vmem:[%s422 + $0x88] sm:$0xff]
          %v2224 = vld [vmem:[%s422 + $0x90] sm:$0xff]
          %v2225 = vld [vmem:[%s422 + $0x98] sm:$0xff]
          %v2226 = vld [vmem:[%s422 + $0xa0] sm:$0xff]
          %v2227 = vld [vmem:[%s422 + $0xa8] sm:$0xff]
          %v2228 = vld [vmem:[%s422 + $0xb0] sm:$0xff]
          %v2229 = vld [vmem:[%s422 + $0xb8] sm:$0xff]
          %v2230 = vld [vmem:[%s422 + $0xc0] sm:$0xff]
          %v2231 = vld [vmem:[%s422 + $0xc8] sm:$0xff]
          %v2232 = vld [vmem:[%s422 + $0xd0] sm:$0xff]
          %v2233 = vld [vmem:[%s422 + $0xd8] sm:$0xff]
          %v2234 = vld [vmem:[%s422 + $0xe0] sm:$0xff]
          %v2235 = vld [vmem:[%s422 + $0xe8] sm:$0xff]
          %v2236 = vld [vmem:[%s422 + $0xf0] sm:$0xff]
          %v2237 = vld [vmem:[%s422 + $0xf8] sm:$0xff]
          %2239 = vset.pattern.permute.xlu0 0
          %2240 = vperm.xlu0 %2239, %v2206
          %v2241 = vpop.permute.xlu0 %2240
          %2244 = vset.pattern.permute.xlu0 0
          %2245 = vperm.xlu0 %2244, %v2207
          %v2246 = vpop.permute.xlu0 %2245
          %2249 = vset.pattern.permute.xlu0 0
          %2250 = vperm.xlu0 %2249, %v2208
          %v2251 = vpop.permute.xlu0 %2250
          %2254 = vset.pattern.permute.xlu0 0
          %2255 = vperm.xlu0 %2254, %v2209
          %v2256 = vpop.permute.xlu0 %2255
          %2259 = vset.pattern.permute.xlu0 0
          %2260 = vperm.xlu0 %2259, %v2210
          %v2261 = vpop.permute.xlu0 %2260
          %2264 = vset.pattern.permute.xlu0 0
          %2265 = vperm.xlu0 %2264, %v2211
          %v2266 = vpop.permute.xlu0 %2265
          %2269 = vset.pattern.permute.xlu0 0
          %2270 = vperm.xlu0 %2269, %v2212
          %v2271 = vpop.permute.xlu0 %2270
          %2274 = vset.pattern.permute.xlu0 0
          %2275 = vperm.xlu0 %2274, %v2213
          %v2276 = vpop.permute.xlu0 %2275
          %2279 = vset.pattern.permute.xlu0 0
          %2280 = vperm.xlu0 %2279, %v2214
          %v2281 = vpop.permute.xlu0 %2280
          %2284 = vset.pattern.permute.xlu0 0
          %2285 = vperm.xlu0 %2284, %v2215
          %v2286 = vpop.permute.xlu0 %2285
          %2289 = vset.pattern.permute.xlu0 0
          %2290 = vperm.xlu0 %2289, %v2216
          %v2291 = vpop.permute.xlu0 %2290
          %2294 = vset.pattern.permute.xlu0 0
          %2295 = vperm.xlu0 %2294, %v2217
          %v2296 = vpop.permute.xlu0 %2295
          %2299 = vset.pattern.permute.xlu0 0
          %2300 = vperm.xlu0 %2299, %v2218
          %v2301 = vpop.permute.xlu0 %2300
          %2304 = vset.pattern.permute.xlu0 0
          %2305 = vperm.xlu0 %2304, %v2219
          %v2306 = vpop.permute.xlu0 %2305
          %2309 = vset.pattern.permute.xlu0 0
          %2310 = vperm.xlu0 %2309, %v2220
          %v2311 = vpop.permute.xlu0 %2310
          %2314 = vset.pattern.permute.xlu0 0
          %2315 = vperm.xlu0 %2314, %v2221
          %v2316 = vpop.permute.xlu0 %2315
          %2319 = vset.pattern.permute.xlu0 0
          %2320 = vperm.xlu0 %2319, %v2222
          %v2321 = vpop.permute.xlu0 %2320
          %2324 = vset.pattern.permute.xlu0 0
          %2325 = vperm.xlu0 %2324, %v2223
          %v2326 = vpop.permute.xlu0 %2325
          %2329 = vset.pattern.permute.xlu0 0
          %2330 = vperm.xlu0 %2329, %v2224
          %v2331 = vpop.permute.xlu0 %2330
          %2334 = vset.pattern.permute.xlu0 0
          %2335 = vperm.xlu0 %2334, %v2225
          %v2336 = vpop.permute.xlu0 %2335
          %2339 = vset.pattern.permute.xlu0 0
          %2340 = vperm.xlu0 %2339, %v2226
          %v2341 = vpop.permute.xlu0 %2340
          %2344 = vset.pattern.permute.xlu0 0
          %2345 = vperm.xlu0 %2344, %v2227
          %v2346 = vpop.permute.xlu0 %2345
          %2349 = vset.pattern.permute.xlu0 0
          %2350 = vperm.xlu0 %2349, %v2228
          %v2351 = vpop.permute.xlu0 %2350
          %2354 = vset.pattern.permute.xlu0 0
          %2355 = vperm.xlu0 %2354, %v2229
          %v2356 = vpop.permute.xlu0 %2355
          %2359 = vset.pattern.permute.xlu0 0
          %2360 = vperm.xlu0 %2359, %v2230
          %v2361 = vpop.permute.xlu0 %2360
          %2364 = vset.pattern.permute.xlu0 0
          %2365 = vperm.xlu0 %2364, %v2231
          %v2366 = vpop.permute.xlu0 %2365
          %2369 = vset.pattern.permute.xlu0 0
          %2370 = vperm.xlu0 %2369, %v2232
          %v2371 = vpop.permute.xlu0 %2370
          %2374 = vset.pattern.permute.xlu0 0
          %2375 = vperm.xlu0 %2374, %v2233
          %v2376 = vpop.permute.xlu0 %2375
          %2379 = vset.pattern.permute.xlu0 0
          %2380 = vperm.xlu0 %2379, %v2234
          %v2381 = vpop.permute.xlu0 %2380
          %2384 = vset.pattern.permute.xlu0 0
          %2385 = vperm.xlu0 %2384, %v2235
          %v2386 = vpop.permute.xlu0 %2385
          %2389 = vset.pattern.permute.xlu0 0
          %2390 = vperm.xlu0 %2389, %v2236
          %v2391 = vpop.permute.xlu0 %2390
          %2394 = vset.pattern.permute.xlu0 0
          %2395 = vperm.xlu0 %2394, %v2237
          %v2396 = vpop.permute.xlu0 %2395
          %v2398 = vmul.f32 %v2080, %v2241
          %v2399 = vmul.f32 %v2083, %v2246
          %v2400 = vmul.f32 %v2088, %v2251
          %v2401 = vmul.f32 %v2091, %v2256
          %v2402 = vmul.f32 %v2096, %v2261
          %v2403 = vmul.f32 %v2099, %v2266
          %v2404 = vmul.f32 %v2104, %v2271
          %v2405 = vmul.f32 %v2107, %v2276
          %v2406 = vmul.f32 %v2112, %v2281
          %v2407 = vmul.f32 %v2115, %v2286
          %v2408 = vmul.f32 %v2120, %v2291
          %v2409 = vmul.f32 %v2123, %v2296
          %v2410 = vmul.f32 %v2128, %v2301
          %v2411 = vmul.f32 %v2131, %v2306
          %v2412 = vmul.f32 %v2136, %v2311
          %v2413 = vmul.f32 %v2139, %v2316
          %v2414 = vmul.f32 %v2144, %v2321
          %v2415 = vmul.f32 %v2147, %v2326
          %v2416 = vmul.f32 %v2152, %v2331
          %v2417 = vmul.f32 %v2155, %v2336
          %v2418 = vmul.f32 %v2160, %v2341
          %v2419 = vmul.f32 %v2163, %v2346
          %v2420 = vmul.f32 %v2168, %v2351
          %v2421 = vmul.f32 %v2171, %v2356
          %v2422 = vmul.f32 %v2176, %v2361
          %v2423 = vmul.f32 %v2179, %v2366
          %v2424 = vmul.f32 %v2184, %v2371
          %v2425 = vmul.f32 %v2187, %v2376
          %v2426 = vmul.f32 %v2192, %v2381
          %v2427 = vmul.f32 %v2195, %v2386
          %v2428 = vmul.f32 %v2200, %v2391
          %v2429 = vmul.f32 %v2203, %v2396
          %v2430 = vld [vmem:[%s6] sm:$0x1]
          %v2432 = vlaneseq
          %v2433 = vshrl.u32 %v2432, 7
          %v2434 = vsub.s32 0, %v2433
          %v2435 = vrot.slane %v2430, %v2434
          %v2437 = vadd.f32 %v2398, %v2435
          %v2438 = vadd.f32 %v2399, %v2435
          %v2439 = vadd.f32 %v2400, %v2435
          %v2440 = vadd.f32 %v2401, %v2435
          %v2441 = vadd.f32 %v2402, %v2435
          %v2442 = vadd.f32 %v2403, %v2435
          %v2443 = vadd.f32 %v2404, %v2435
          %v2444 = vadd.f32 %v2405, %v2435
          %v2445 = vadd.f32 %v2406, %v2435
          %v2446 = vadd.f32 %v2407, %v2435
          %v2447 = vadd.f32 %v2408, %v2435
          %v2448 = vadd.f32 %v2409, %v2435
          %v2449 = vadd.f32 %v2410, %v2435
          %v2450 = vadd.f32 %v2411, %v2435
          %v2451 = vadd.f32 %v2412, %v2435
          %v2452 = vadd.f32 %v2413, %v2435
          %v2453 = vadd.f32 %v2414, %v2435
          %v2454 = vadd.f32 %v2415, %v2435
          %v2455 = vadd.f32 %v2416, %v2435
          %v2456 = vadd.f32 %v2417, %v2435
          %v2457 = vadd.f32 %v2418, %v2435
          %v2458 = vadd.f32 %v2419, %v2435
          %v2459 = vadd.f32 %v2420, %v2435
          %v2460 = vadd.f32 %v2421, %v2435
          %v2461 = vadd.f32 %v2422, %v2435
          %v2462 = vadd.f32 %v2423, %v2435
          %v2463 = vadd.f32 %v2424, %v2435
          %v2464 = vadd.f32 %v2425, %v2435
          %v2465 = vadd.f32 %v2426, %v2435
          %v2466 = vadd.f32 %v2427, %v2435
          %v2467 = vadd.f32 %v2428, %v2435
          %v2468 = vadd.f32 %v2429, %v2435
          %2469 = vst [vmem:[%s401] sm:$0xff] %v2437
          %2470 = vst [vmem:[%s401 + $0x8] sm:$0xff] %v2438
          %2471 = vst [vmem:[%s401 + $0x10] sm:$0xff] %v2439
          %2472 = vst [vmem:[%s401 + $0x18] sm:$0xff] %v2440
          %2473 = vst [vmem:[%s401 + $0x20] sm:$0xff] %v2441
          %2474 = vst [vmem:[%s401 + $0x28] sm:$0xff] %v2442
          %2475 = vst [vmem:[%s401 + $0x30] sm:$0xff] %v2443
          %2476 = vst [vmem:[%s401 + $0x38] sm:$0xff] %v2444
          %2477 = vst [vmem:[%s401 + $0x40] sm:$0xff] %v2445
          %2478 = vst [vmem:[%s401 + $0x48] sm:$0xff] %v2446
          %2479 = vst [vmem:[%s401 + $0x50] sm:$0xff] %v2447
          %2480 = vst [vmem:[%s401 + $0x58] sm:$0xff] %v2448
          %2481 = vst [vmem:[%s401 + $0x60] sm:$0xff] %v2449
          %2482 = vst [vmem:[%s401 + $0x68] sm:$0xff] %v2450
          %2483 = vst [vmem:[%s401 + $0x70] sm:$0xff] %v2451
          %2484 = vst [vmem:[%s401 + $0x78] sm:$0xff] %v2452
          %2485 = vst [vmem:[%s401 + $0x80] sm:$0xff] %v2453
          %2486 = vst [vmem:[%s401 + $0x88] sm:$0xff] %v2454
          %2487 = vst [vmem:[%s401 + $0x90] sm:$0xff] %v2455
          %2488 = vst [vmem:[%s401 + $0x98] sm:$0xff] %v2456
          %2489 = vst [vmem:[%s401 + $0xa0] sm:$0xff] %v2457
          %2490 = vst [vmem:[%s401 + $0xa8] sm:$0xff] %v2458
          %2491 = vst [vmem:[%s401 + $0xb0] sm:$0xff] %v2459
          %2492 = vst [vmem:[%s401 + $0xb8] sm:$0xff] %v2460
          %2493 = vst [vmem:[%s401 + $0xc0] sm:$0xff] %v2461
          %2494 = vst [vmem:[%s401 + $0xc8] sm:$0xff] %v2462
          %2495 = vst [vmem:[%s401 + $0xd0] sm:$0xff] %v2463
          %2496 = vst [vmem:[%s401 + $0xd8] sm:$0xff] %v2464
          %2497 = vst [vmem:[%s401 + $0xe0] sm:$0xff] %v2465
          %2498 = vst [vmem:[%s401 + $0xe8] sm:$0xff] %v2466
          %2499 = vst [vmem:[%s401 + $0xf0] sm:$0xff] %v2467
          %2500 = vst [vmem:[%s401 + $0xf8] sm:$0xff] %v2468
        $region72: #{tpu_custom_call.1} parent=47 // pred_fallthru
          _
        %s2501 = sand.u32 %s223, 1
        %s2502 = scalar_lea.sflag [#allocation6], %s2501
        %s2503 = sand.u32 %s223, 1
        %s2504 = smul.addr %s2503, 256
        %s2505 = scalar_lea.vmem [#allocation10], %s2504
        // Predicated region
        $region73: #{tpu_custom_call.1} parent=47 // pred_check
          %p2506 = pneg %p233
        $region74: #{tpu_custom_call.1} parent=47 // pred_check_branch
          %2508 = sbr.rel (%p2506) target = $region76
        $region75: #{tpu_custom_call.1} parent=47 // pred_region
          %p2509 = scmp.eq.s32.totalorder %s29, 2
          %s2510 = scalar_select %p2509, %s30, 0
          %s2511 = smul.u32 32, %s2510
          %s2513 = ssub.s32 4096, 4096
          %2514 = vsyncadd %s2502, %s2513
          %s2515 = smul.addr %s2511, 128
          %s2516 = scalar_lea.hbm %s7, %s2515
          %s2517 = sshll.u32 %s2505, 4
          %s2518 = int_to_ptr.vmem [resolvable:$true] %s2517
          %2523 = dma.vmem_to_hbm [thread:$0]  %s2518, 4096, %s2516, %s2502, 128, 128, 8
        $region76: #{tpu_custom_call.1} parent=47 // pred_fallthru
          _
      $region48: #{tpu_custom_call.1} parent=5 // pred_fallthru
        _
      %p2524 = scmp.le.s32.totalorder 2, %s20
      // Predicated region
      $region77: #{tpu_custom_call.1} parent=5 // pred_check
        %p2525 = pneg %p2524
      $region78: #{tpu_custom_call.1} parent=5 // pred_check_branch
        %2527 = sbr.rel (%p2525) target = $region80
      $region79: #{tpu_custom_call.1} parent=5 // pred_region
        %s2528 = ssub.s32 %s20, 2
        // Predicated region
        $region81: #{tpu_custom_call.1} parent=79 // pred_check
          %p2529 = pneg %p239
        $region82: #{tpu_custom_call.1} parent=79 // pred_check_branch
          %2531 = sbr.rel (%p2529) target = $region84
        $region83: #{tpu_custom_call.1} parent=79 // pred_region
          %s2532 = sand.u32 %s224, 1
          %s2533 = scalar_lea.sflag [#allocation6], %s2532
          %s2534 = sand.u32 %s224, 1
          %s2535 = smul.addr %s2534, 256
          %s2536 = scalar_lea.vmem [#allocation10], %s2535
          %2537 = dma.done %s2533, 4096
        $region84: #{tpu_custom_call.1} parent=79 // pred_fallthru
          _
      $region80: #{tpu_custom_call.1} parent=5 // pred_fallthru
        _
    $region6: #{tpu_custom_call.1} parent=1 // loop_footer
      %s24 = sadd.s32 1, %s20
    $region7: #{tpu_custom_call.1} parent=1 // loop_footer_branch
      %19 = sbr.rel target = $region3
    $region8: #{tpu_custom_call.1} parent=1 // loop_exit
      _
    %2538 = vsyncpa [#allocation5], 1
    %s2539 = scalar_lea.sflag [#allocation5], 1
    %2540 = vsyncpa %s2539, 1
    %2541 = vsyncpa [#allocation8], 1
    %2542 = vsyncpa [#allocation6], 1
    %s2543 = scalar_lea.sflag [#allocation6], 1
    %2544 = vsyncpa %s2543, 1

</llo_original>
